<compile_context>
chip_gen: v7x
topology: tpu7x:2x2x1
jax: 0.10.0
libtpu: 0.0.40
codegen_flags: <defaults>
</compile_context>

<pallas_src>
import functools

import jax
import jax.numpy as jnp
from jax import lax
from jax.experimental import pallas as pl
from jax.experimental.pallas import tpu as pltpu

EPS = 1e-5  # BatchNorm1d default eps


# --------------------------------------------------------------------------
# Tiling helpers
# --------------------------------------------------------------------------
def _pick_batch_tile(n, l):
    """Pick B_TILE rows per grid step.

    Prefers lane-dense column widths (B_TILE*L a multiple of 128), ~512 lanes
    wide, while keeping >=2 grid steps when the batch allows (software
    pipelining + megacore). Falls back to the whole batch in one block (the
    block then equals the full array, which always satisfies the (8,128) rule).
    """
    divisors = [d for d in range(1, n + 1) if n % d == 0]
    dense = [d for d in divisors if (d * l) % 128 == 0]
    if not dense:
        return n
    capped = [d for d in dense if d * l <= 2048] or dense
    multi = [d for d in capped if n // d >= 2] or capped
    return min(multi, key=lambda d: abs(d * l - 512))


def _vmem_limit_bytes(c_in, c_out, k, tile_cols, nsplit):
    """Generous per-step VMEM footprint estimate -> explicit scoped limit."""
    elems = 2 * (c_in + c_out) * tile_cols          # double-buffered in/out blocks
    elems += 2 * c_out * tile_cols                  # stats accumulators (scratch)
    elems += (k + 1) * c_in * (tile_cols + k)       # padded copy + per-tap slices
    elems += 3 * c_out * tile_cols                  # y, y*y, scaled temporaries
    elems += 2 * k * c_out * c_in + 16 * c_out * max(nsplit, 1)
    est = 4 * elems
    # 2x margin, floor 4 MiB, cap 32 MiB (safe on every generation incl. v7x).
    return int(min(32 << 20, max(4 << 20, 2 * est)))


# --------------------------------------------------------------------------
# Conv helper (shared by both kernels)
# --------------------------------------------------------------------------
def _conv_tile(x, w_ref, *, K, pad_l, L):
    """'same' Conv1d of a lane-flattened batch tile as K accumulated MXU matmuls.

    x     : (C_in, T) f32, T = B_TILE*L (batch rows concatenated on lanes)
    w_ref : Ref (K, C_out, C_in)
    ->      (C_out, T) f32
    """
    C_in, T = x.shape
    pad_r = K - 1 - pad_l

    # Lane position within each length-L row (for masking taps at row joins).
    pos = lax.broadcasted_iota(jnp.int32, (1, T), 1) % L

    # Zero-pad the flattened lane axis so every static tap slice stays in bounds.
    parts = []
    if pad_l:
        parts.append(jnp.zeros((C_in, pad_l), jnp.float32))
    parts.append(x)
    if pad_r:
        parts.append(jnp.zeros((C_in, pad_r), jnp.float32))
    xp = jnp.concatenate(parts, axis=1) if len(parts) > 1 else x

    acc = None
    for t in range(K):                      # K is small; static unroll
        off = t - pad_l
        xt = xp[:, t:t + T]                 # == x[:, j + off] at valid lanes
        if off != 0:
            valid = jnp.logical_and(pos + off >= 0, pos + off < L)
            xt = jnp.where(valid, xt, 0.0)  # zero taps crossing a row boundary
        y_t = jnp.dot(w_ref[t].astype(jnp.float32), xt,
                      preferred_element_type=jnp.float32)
        acc = y_t if acc is None else acc + y_t
    return acc


# --------------------------------------------------------------------------
# Pass 1: conv + per-channel batch statistics (lane-dense accumulation)
# --------------------------------------------------------------------------
def conv_stats_kernel(x_ref, w_ref, sum_ref, sq_ref, acc_s, acc_q,
                      *, K, pad_l, L):
    """x_ref : (C_in, T) tile;  w_ref : (K, C_out, C_in)
    sum_ref / sq_ref : (1, C_out, 1) accumulator outputs (one per split)
    acc_s / acc_q    : (C_out, T) VMEM scratch, lane-dense partial sums."""
    b = pl.program_id(1)

    @pl.when(b == 0)
    def _init():
        acc_s[...] = jnp.zeros_like(acc_s)
        acc_q[...] = jnp.zeros_like(acc_q)

    y = _conv_tile(x_ref[...].astype(jnp.float32), w_ref, K=K, pad_l=pad_l, L=L)
    acc_s[...] += y          # per-lane VPU adds, hidden under the matmuls
    acc_q[...] += y * y

    @pl.when(b == pl.num_programs(1) - 1)
    def _finalize():         # single cross-lane (XLU) reduce per split
        sum_ref[0] = jnp.sum(acc_s[...], axis=1, keepdims=True)
        sq_ref[0] = jnp.sum(acc_q[...], axis=1, keepdims=True)


# --------------------------------------------------------------------------
# Pass 2: conv + BN (folded scale/shift computed in-kernel) + ReLU
# --------------------------------------------------------------------------
def conv_bn_relu_kernel(x_ref, w_ref, sum_ref, sq_ref, gamma_ref, beta_ref,
                        o_ref, *, K, pad_l, L, inv_count, eps):
    """x_ref : (C_in, T);  o_ref : (C_out, T) lane-dense output block.
    sum_ref / sq_ref : (NSPLIT, C_out, 1) partial batch statistics."""
    y = _conv_tile(x_ref[...].astype(jnp.float32), w_ref, K=K, pad_l=pad_l, L=L)

    # Combine megacore partial accumulators and fold BN into one per-channel
    # FMA. Recomputed every step (a handful of (C_out,1) VPU ops + one EUP
    # rsqrt) so this grid axis can stay fully "parallel" (megacore-safe).
    nsplit = sum_ref.shape[0]
    ch_sum = sum_ref[0]
    ch_sq = sq_ref[0]
    for s in range(1, nsplit):
        ch_sum = ch_sum + sum_ref[s]
        ch_sq = ch_sq + sq_ref[s]
    mean = ch_sum * inv_count
    var = jnp.maximum(ch_sq * inv_count - mean * mean, 0.0)
    scale = gamma_ref[...] * lax.rsqrt(var + eps)      # (C_out, 1)
    shift = beta_ref[...] - mean * scale               # (C_out, 1)

    o_ref[...] = jnp.maximum(y * scale + shift, 0.0).astype(o_ref.dtype)


# --------------------------------------------------------------------------
# Wrappers
# --------------------------------------------------------------------------
def cnn_block_flat(x_flat, w_oik, gamma, beta, *, n_batch, length):
    """Core path in the lane-dense layout.

    x_flat : (C_in, N*L)  — batch rows concatenated along the lane axis.
    Returns (C_out, N*L). Stacked CNN blocks should stay in this layout.
    """
    C_in, total = x_flat.shape
    C_out, _, K = w_oik.shape
    N, L = n_batch, length
    assert total == N * L

    pad_l = (K - 1) // 2                       # PyTorch 'same' (extra on right)

    b_tile = _pick_batch_tile(N, L)
    tile_cols = b_tile * L
    num_tiles = N // b_tile
    # Split pass-1 accumulation across two independent partial accumulators so
    # both TensorCores are usable on v7x; no effect on v5e/v6e (1 TC).
    nsplit = 2 if (num_tiles >= 2 and num_tiles % 2 == 0) else 1
    tiles_per_split = num_tiles // nsplit
    vmem_limit = _vmem_limit_bytes(C_in, C_out, K, tile_cols, nsplit)

    # Weight as (K, C_out, C_in): w3[t] is the (C_out, C_in) matrix for tap t.
    w3 = jnp.transpose(w_oik, (2, 0, 1)).astype(jnp.float32)
    gamma2 = gamma.astype(jnp.float32).reshape(C_out, 1)
    beta2 = beta.astype(jnp.float32).reshape(C_out, 1)

    def x_index_map(tps):
        return lambda s, b: (0, s * tps + b)

    # ------------- pass 1: conv + per-channel batch statistics -------------
    stats_kernel = functools.partial(conv_stats_kernel, K=K, pad_l=pad_l, L=L)
    ch_sum, ch_sq = pl.pallas_call(
        stats_kernel,
        out_shape=(jax.ShapeDtypeStruct((nsplit, C_out, 1), jnp.float32),
                   jax.ShapeDtypeStruct((nsplit, C_out, 1), jnp.float32)),
        grid=(nsplit, tiles_per_split),
        in_specs=[
            pl.BlockSpec((C_in, tile_cols), x_index_map(tiles_per_split)),
            pl.BlockSpec((K, C_out, C_in), lambda s, b: (0, 0, 0)),
        ],
        out_specs=(
            pl.BlockSpec((1, C_out, 1), lambda s, b: (s, 0, 0)),
            pl.BlockSpec((1, C_out, 1), lambda s, b: (s, 0, 0)),
        ),
        scratch_shapes=[pltpu.VMEM((C_out, tile_cols), jnp.float32),
                        pltpu.VMEM((C_out, tile_cols), jnp.float32)],
        compiler_params=pltpu.CompilerParams(
            dimension_semantics=("parallel", "arbitrary"),
            vmem_limit_bytes=vmem_limit),
    )(x_flat, w3)

    # ------------- pass 2: conv + BN(scale,shift) + ReLU -------------------
    # Recompute-vs-store: recomputing the conv costs one extra C_in*L read per
    # row vs 2*C_out*L of y write+read; with C_out >= C_in recompute is the
    # bandwidth-optimal choice — do NOT "optimize" this into a stored y.
    apply_kernel = functools.partial(
        conv_bn_relu_kernel, K=K, pad_l=pad_l, L=L,
        inv_count=1.0 / float(N * L), eps=EPS)
    y_flat = pl.pallas_call(
        apply_kernel,
        out_shape=jax.ShapeDtypeStruct((C_out, N * L), jnp.float32),
        grid=(num_tiles,),
        in_specs=[
            pl.BlockSpec((C_in, tile_cols), lambda b: (0, b)),
            pl.BlockSpec((K, C_out, C_in), lambda b: (0, 0, 0)),
            pl.BlockSpec((nsplit, C_out, 1), lambda b: (0, 0, 0)),
            pl.BlockSpec((nsplit, C_out, 1), lambda b: (0, 0, 0)),
            pl.BlockSpec((C_out, 1), lambda b: (0, 0)),
            pl.BlockSpec((C_out, 1), lambda b: (0, 0)),
        ],
        out_specs=pl.BlockSpec((C_out, tile_cols), lambda b: (0, b)),
        compiler_params=pltpu.CompilerParams(
            dimension_semantics=("parallel",),
            vmem_limit_bytes=vmem_limit),
    )(x_flat, w3, ch_sum, ch_sq, gamma2, beta2)

    return y_flat


@jax.jit
def cnn_block(x_ncl, w_oik, bias, gamma, beta):
    """x_ncl: (N, C_in, L) (PyTorch Conv1d layout). Returns (N, C_out, L).

    `bias` is accepted for API parity but unused: training-mode BatchNorm
    subtracts the per-channel batch mean, which cancels the conv bias exactly.
    """
    del bias
    N, C_in, L = x_ncl.shape
    C_out = w_oik.shape[0]

    # Layout plumbing: flatten batch onto the lane axis (done once; a stack of
    # CNN blocks would stay in this layout via cnn_block_flat).
    x_flat = jnp.transpose(x_ncl, (1, 0, 2)).reshape(C_in, N * L)
    y_flat = cnn_block_flat(x_flat, w_oik, gamma, beta, n_batch=N, length=L)
    return jnp.transpose(y_flat.reshape(C_out, N, L), (1, 0, 2))


def cnn_block_reference(x_ncl, w_oik, bias, gamma, beta):
    """Plain-JAX reference matching PyTorch semantics (with conv bias)."""
    y = lax.conv_general_dilated(
        x_ncl, w_oik, window_strides=(1,), padding="SAME",
        dimension_numbers=("NCH", "OIH", "NCH"))
    y = y + bias[None, :, None]
    mean = jnp.mean(y, axis=(0, 2), keepdims=True)
    var = jnp.mean((y - mean) ** 2, axis=(0, 2), keepdims=True)
    y = (y - mean) * lax.rsqrt(var + EPS)
    y = y * gamma[None, :, None] + beta[None, :, None]
    return jnp.maximum(y, 0.0)


if __name__ == "__main__":
    key = jax.random.PRNGKey(0)
    # Main config exercises the lane-dense multi-tile + megacore-split path;
    # the second exercises the small-batch fallback (single full-array block).
    for (N, C_IN, C_OUT, L, K) in [(16, 4, 8, 16, 3), (2, 4, 8, 16, 3)]:
        key, k_x, k_w, k_b, k_g, k_bt = jax.random.split(key, 6)

        x = jax.random.normal(k_x, (N, C_IN, L), dtype=jnp.float32)
        bound = 1.0 / (C_IN * K) ** 0.5
        w = jax.random.uniform(k_w, (C_OUT, C_IN, K), jnp.float32, -bound, bound)
        b = jax.random.uniform(k_b, (C_OUT,), jnp.float32, -bound, bound)
        gamma = 0.5 + jax.random.uniform(k_g, (C_OUT,), jnp.float32, 0.0, 1.0)
        beta = jax.random.uniform(k_bt, (C_OUT,), jnp.float32, -0.5, 0.5)

        out = jax.block_until_ready(cnn_block(x, w, b, gamma, beta))
        ref = cnn_block_reference(x, w, b, gamma, beta)

        assert out.shape == (N, C_OUT, L)
        assert jnp.allclose(out, ref, atol=1e-4, rtol=1e-4), (
            f"mismatch at shape {(N, C_IN, C_OUT, L, K)}: "
            f"max err {jnp.max(jnp.abs(out - ref))}")

    print("KERNEL_OK")
</pallas_src>

<mosaic_0001>
module attributes {stable_mosaic.version = 11 : i64} {
  func.func @conv_stats_kernel(%arg0: i32, %arg1: i32, %arg2: memref<4x128xf32, #tpu.memory_space<vmem>>, %arg3: memref<3x8x4xf32, #tpu.memory_space<vmem>>, %arg4: memref<1x8x1xf32, #tpu.memory_space<vmem>>, %arg5: memref<1x8x1xf32, #tpu.memory_space<vmem>>, %arg6: memref<8x128xf32, #tpu.memory_space<vmem>>, %arg7: memref<8x128xf32, #tpu.memory_space<vmem>>) attributes {dimension_semantics = [#tpu.dimension_semantics<parallel>, #tpu.dimension_semantics<arbitrary>], iteration_bounds = array<i64: 2, 1>, scalar_prefetch = 0 : i64, scratch_operands = 2 : i64, tpu.core_type = #tpu.core_type<tc>, window_params = [{transform_indices = @transform_0, window_bounds = array<i64: 4, 128>}, {pipeline_mode = #tpu.pipeline_mode<synchronous>, transform_indices = @transform_1, window_bounds = array<i64: 3, 8, 4>}, {transform_indices = @transform_2, window_bounds = array<i64: 1, 8, 1>}, {transform_indices = @transform_3, window_bounds = array<i64: 1, 8, 1>}]} {
    %c0_i32 = arith.constant 0 : i32
    %0 = arith.cmpi eq, %arg1, %c0_i32 : i32
    %1 = arith.extui %0 : i1 to i32
    %c0_i32_0 = arith.constant 0 : i32
    %2 = arith.cmpi ne, %1, %c0_i32_0 : i32
    scf.if %2 {
      %cst_36 = arith.constant 0.000000e+00 : f32
      %74 = vector.broadcast %cst_36 : f32 to vector<8x128xf32>
      %c0_37 = arith.constant 0 : index
      %c0_38 = arith.constant 0 : index
      %75 = vector.load %arg6[%c0_37, %c0_38] : memref<8x128xf32, #tpu.memory_space<vmem>>, vector<8x128xf32>
      tpu.vector_store %arg6[%c0_37, %c0_38], %74 {strides = array<i32>} : memref<8x128xf32, #tpu.memory_space<vmem>>, vector<8x128xf32>,
      %cst_39 = arith.constant 0.000000e+00 : f32
      %76 = vector.broadcast %cst_39 : f32 to vector<8x128xf32>
      %c0_40 = arith.constant 0 : index
      %c0_41 = arith.constant 0 : index
      %77 = vector.load %arg7[%c0_40, %c0_41] : memref<8x128xf32, #tpu.memory_space<vmem>>, vector<8x128xf32>
      tpu.vector_store %arg7[%c0_40, %c0_41], %76 {strides = array<i32>} : memref<8x128xf32, #tpu.memory_space<vmem>>, vector<8x128xf32>,
    } else {
    }
    %c0 = arith.constant 0 : index
    %c0_1 = arith.constant 0 : index
    %3 = vector.load %arg2[%c0, %c0_1] : memref<4x128xf32, #tpu.memory_space<vmem>>, vector<4x128xf32>
    %4 = tpu.iota {dimensions = array<i32: 1>} : vector<1x128xi32>
    %c16_i32 = arith.constant 16 : i32
    %c0_i32_2 = arith.constant 0 : i32
    %5 = arith.cmpi eq, %c16_i32, %c0_i32_2 : i32
    %c1_i32 = arith.constant 1 : i32
    %6 = arith.select %5, %c1_i32, %c16_i32 : i32
    %7 = vector.broadcast %6 : i32 to vector<1x128xi32>
    %8 = arith.remsi %4, %7 : vector<1x128xi32>
    %c0_i32_3 = arith.constant 0 : i32
    %9 = vector.broadcast %c0_i32_3 : i32 to vector<1x128xi32>
    %10 = arith.cmpi ne, %8, %9 : vector<1x128xi32>
    %c0_i32_4 = arith.constant 0 : i32
    %11 = vector.broadcast %c0_i32_4 : i32 to vector<1x128xi32>
    %12 = arith.cmpi slt, %8, %11 : vector<1x128xi32>
    %c0_i32_5 = arith.constant 0 : i32
    %13 = arith.cmpi slt, %6, %c0_i32_5 : i32
    %14 = vector.broadcast %13 : i1 to vector<1x128xi1>
    %15 = vector.broadcast %14 : vector<1x128xi1> to vector<1x128xi1>
    %16 = arith.xori %12, %15 : vector<1x128xi1>
    %17 = arith.andi %16, %10 : vector<1x128xi1>
    %18 = vector.broadcast %6 : i32 to vector<1x128xi32>
    %19 = arith.addi %8, %18 : vector<1x128xi32>
    %20 = arith.select %17, %19, %8 : vector<1x128xi1>, vector<1x128xi32>
    %cst = arith.constant 0.000000e+00 : f32
    %21 = vector.broadcast %cst : f32 to vector<4x1xf32>
    %cst_6 = arith.constant 0.000000e+00 : f32
    %22 = vector.broadcast %cst_6 : f32 to vector<4x1xf32>
    %23 = tpu.concatenate %21, %3, %22 in 1 : vector<4x1xf32>, vector<4x128xf32>, vector<4x1xf32> -> vector<4x130xf32>
    %24 = vector.extract_strided_slice %23 {offsets = [0, 0], sizes = [4, 128], strides = [1, 1]} : vector<4x130xf32> to vector<4x128xf32>
    %c-1_i32 = arith.constant -1 : i32
    %25 = vector.broadcast %c-1_i32 : i32 to vector<1x128xi32>
    %26 = arith.addi %20, %25 : vector<1x128xi32>
    %c0_i32_7 = arith.constant 0 : i32
    %27 = vector.broadcast %c0_i32_7 : i32 to vector<1x128xi32>
    %28 = arith.cmpi sge, %26, %27 : vector<1x128xi32>
    %c-1_i32_8 = arith.constant -1 : i32
    %29 = vector.broadcast %c-1_i32_8 : i32 to vector<1x128xi32>
    %30 = arith.addi %20, %29 : vector<1x128xi32>
    %c16_i32_9 = arith.constant 16 : i32
    %31 = vector.broadcast %c16_i32_9 : i32 to vector<1x128xi32>
    %32 = arith.cmpi slt, %30, %31 : vector<1x128xi32>
    %33 = arith.andi %28, %32 : vector<1x128xi1>
    %cst_10 = arith.constant 0.000000e+00 : f32
    %34 = vector.shape_cast %33 : vector<1x128xi1> to vector<1x128xi1>
    %35 = vector.broadcast %34 : vector<1x128xi1> to vector<4x128xi1>
    %36 = vector.broadcast %cst_10 : f32 to vector<4x128xf32>
    %37 = arith.select %35, %24, %36 : vector<4x128xi1>, vector<4x128xf32>
    %c0_11 = arith.constant 0 : index
    %c0_12 = arith.constant 0 : index
    %c0_13 = arith.constant 0 : index
    %38 = vector.load %arg3[%c0_11, %c0_12, %c0_13] : memref<3x8x4xf32, #tpu.memory_space<vmem>>, vector<1x8x4xf32>
    %39 = vector.shape_cast %38 : vector<1x8x4xf32> to vector<8x4xf32>
    %cst_14 = arith.constant dense<0.000000e+00> : vector<8x128xf32>
    %40 = tpu.matmul %39, %37, %cst_14 {dimension_numbers = #tpu.dot_dimension_numbers<[1], [0], [0], [1], [0, 0, 1, 1], [], []>} : vector<8x4xf32>, vector<4x128xf32>, vector<8x128xf32> -> vector<8x128xf32>
    %41 = vector.extract_strided_slice %23 {offsets = [0, 1], sizes = [4, 128], strides = [1, 1]} : vector<4x130xf32> to vector<4x128xf32>
    %c1 = arith.constant 1 : index
    %c0_15 = arith.constant 0 : index
    %c0_16 = arith.constant 0 : index
    %42 = vector.load %arg3[%c1, %c0_15, %c0_16] : memref<3x8x4xf32, #tpu.memory_space<vmem>>, vector<1x8x4xf32>
    %43 = vector.shape_cast %42 : vector<1x8x4xf32> to vector<8x4xf32>
    %cst_17 = arith.constant dense<0.000000e+00> : vector<8x128xf32>
    %44 = tpu.matmul %43, %41, %cst_17 {dimension_numbers = #tpu.dot_dimension_numbers<[1], [0], [0], [1], [0, 0, 1, 1], [], []>} : vector<8x4xf32>, vector<4x128xf32>, vector<8x128xf32> -> vector<8x128xf32>
    %45 = arith.addf %40, %44 : vector<8x128xf32>
    %46 = vector.extract_strided_slice %23 {offsets = [0, 2], sizes = [4, 128], strides = [1, 1]} : vector<4x130xf32> to vector<4x128xf32>
    %c1_i32_18 = arith.constant 1 : i32
    %47 = vector.broadcast %c1_i32_18 : i32 to vector<1x128xi32>
    %48 = arith.addi %20, %47 : vector<1x128xi32>
    %c0_i32_19 = arith.constant 0 : i32
    %49 = vector.broadcast %c0_i32_19 : i32 to vector<1x128xi32>
    %50 = arith.cmpi sge, %48, %49 : vector<1x128xi32>
    %c1_i32_20 = arith.constant 1 : i32
    %51 = vector.broadcast %c1_i32_20 : i32 to vector<1x128xi32>
    %52 = arith.addi %20, %51 : vector<1x128xi32>
    %c16_i32_21 = arith.constant 16 : i32
    %53 = vector.broadcast %c16_i32_21 : i32 to vector<1x128xi32>
    %54 = arith.cmpi slt, %52, %53 : vector<1x128xi32>
    %55 = arith.andi %50, %54 : vector<1x128xi1>
    %cst_22 = arith.constant 0.000000e+00 : f32
    %56 = vector.shape_cast %55 : vector<1x128xi1> to vector<1x128xi1>
    %57 = vector.broadcast %56 : vector<1x128xi1> to vector<4x128xi1>
    %58 = vector.broadcast %cst_22 : f32 to vector<4x128xf32>
    %59 = arith.select %57, %46, %58 : vector<4x128xi1>, vector<4x128xf32>
    %c2 = arith.constant 2 : index
    %c0_23 = arith.constant 0 : index
    %c0_24 = arith.constant 0 : index
    %60 = vector.load %arg3[%c2, %c0_23, %c0_24] : memref<3x8x4xf32, #tpu.memory_space<vmem>>, vector<1x8x4xf32>
    %61 = vector.shape_cast %60 : vector<1x8x4xf32> to vector<8x4xf32>
    %cst_25 = arith.constant dense<0.000000e+00> : vector<8x128xf32>
    %62 = tpu.matmul %61, %59, %cst_25 {dimension_numbers = #tpu.dot_dimension_numbers<[1], [0], [0], [1], [0, 0, 1, 1], [], []>} : vector<8x4xf32>, vector<4x128xf32>, vector<8x128xf32> -> vector<8x128xf32>
    %63 = arith.addf %45, %62 : vector<8x128xf32>
    %c0_26 = arith.constant 0 : index
    %c0_27 = arith.constant 0 : index
    %64 = vector.load %arg6[%c0_26, %c0_27] : memref<8x128xf32, #tpu.memory_space<vmem>>, vector<8x128xf32>
    %65 = arith.addf %64, %63 : vector<8x128xf32>
    %c0_28 = arith.constant 0 : index
    %c0_29 = arith.constant 0 : index
    %66 = vector.load %arg6[%c0_28, %c0_29] : memref<8x128xf32, #tpu.memory_space<vmem>>, vector<8x128xf32>
    tpu.vector_store %arg6[%c0_28, %c0_29], %65 {strides = array<i32>} : memref<8x128xf32, #tpu.memory_space<vmem>>, vector<8x128xf32>,
    %c0_30 = arith.constant 0 : index
    %c0_31 = arith.constant 0 : index
    %67 = vector.load %arg7[%c0_30, %c0_31] : memref<8x128xf32, #tpu.memory_space<vmem>>, vector<8x128xf32>
    %68 = arith.mulf %63, %63 : vector<8x128xf32>
    %69 = arith.addf %67, %68 : vector<8x128xf32>
    %c0_32 = arith.constant 0 : index
    %c0_33 = arith.constant 0 : index
    %70 = vector.load %arg7[%c0_32, %c0_33] : memref<8x128xf32, #tpu.memory_space<vmem>>, vector<8x128xf32>
    tpu.vector_store %arg7[%c0_32, %c0_33], %69 {strides = array<i32>} : memref<8x128xf32, #tpu.memory_space<vmem>>, vector<8x128xf32>,
    %c0_i32_34 = arith.constant 0 : i32
    %71 = arith.cmpi eq, %arg1, %c0_i32_34 : i32
    %72 = arith.extui %71 : i1 to i32
    %c0_i32_35 = arith.constant 0 : i32
    %73 = arith.cmpi ne, %72, %c0_i32_35 : i32
    scf.if %73 {
      %c0_36 = arith.constant 0 : index
      %c0_37 = arith.constant 0 : index
      %74 = vector.load %arg6[%c0_36, %c0_37] : memref<8x128xf32, #tpu.memory_space<vmem>>, vector<8x128xf32>
      %cst_38 = arith.constant dense<0.000000e+00> : vector<8xf32>
      %75 = vector.multi_reduction <add>, %74, %cst_38 [1] : vector<8x128xf32> to vector<8xf32>
      %76 = vector.shape_cast %75 : vector<8xf32> to vector<8x1xf32>
      %c0_39 = arith.constant 0 : index
      %c0_40 = arith.constant 0 : index
      %c0_41 = arith.constant 0 : index
      %77 = vector.load %arg4[%c0_39, %c0_40, %c0_41] : memref<1x8x1xf32, #tpu.memory_space<vmem>>, vector<1x8x1xf32>
      %78 = vector.shape_cast %77 : vector<1x8x1xf32> to vector<8x1xf32>
      %79 = vector.shape_cast %76 : vector<8x1xf32> to vector<1x8x1xf32>
      tpu.vector_store %arg4[%c0_39, %c0_40, %c0_41], %79 {strides = array<i32>} : memref<1x8x1xf32, #tpu.memory_space<vmem>>, vector<1x8x1xf32>,
      %c0_42 = arith.constant 0 : index
      %c0_43 = arith.constant 0 : index
      %80 = vector.load %arg7[%c0_42, %c0_43] : memref<8x128xf32, #tpu.memory_space<vmem>>, vector<8x128xf32>
      %cst_44 = arith.constant dense<0.000000e+00> : vector<8xf32>
      %81 = vector.multi_reduction <add>, %80, %cst_44 [1] : vector<8x128xf32> to vector<8xf32>
      %82 = vector.shape_cast %81 : vector<8xf32> to vector<8x1xf32>
      %c0_45 = arith.constant 0 : index
      %c0_46 = arith.constant 0 : index
      %c0_47 = arith.constant 0 : index
      %83 = vector.load %arg5[%c0_45, %c0_46, %c0_47] : memref<1x8x1xf32, #tpu.memory_space<vmem>>, vector<1x8x1xf32>
      %84 = vector.shape_cast %83 : vector<1x8x1xf32> to vector<8x1xf32>
      %85 = vector.shape_cast %82 : vector<8x1xf32> to vector<1x8x1xf32>
      tpu.vector_store %arg5[%c0_45, %c0_46, %c0_47], %85 {strides = array<i32>} : memref<1x8x1xf32, #tpu.memory_space<vmem>>, vector<1x8x1xf32>,
    } else {
    }
    return
  }
  func.func @transform_0(%arg0: i32, %arg1: i32) -> (i32, i32) {
    %c1_i32 = arith.constant 1 : i32
    %0 = arith.muli %arg0, %c1_i32 : i32
    %1 = arith.addi %0, %arg1 : i32
    %c0_i32 = arith.constant 0 : i32
    %c0_i32_0 = arith.constant 0 : i32
    return %c0_i32, %1 : i32, i32
  }
  func.func @transform_1(%arg0: i32, %arg1: i32) -> (i32, i32, i32) {
    %c0_i32 = arith.constant 0 : i32
    %c0_i32_0 = arith.constant 0 : i32
    %c0_i32_1 = arith.constant 0 : i32
    %c0_i32_2 = arith.constant 0 : i32
    return %c0_i32, %c0_i32_0, %c0_i32_1 : i32, i32, i32
  }
  func.func @transform_2(%arg0: i32, %arg1: i32) -> (i32, i32, i32) {
    %c0_i32 = arith.constant 0 : i32
    %c0_i32_0 = arith.constant 0 : i32
    %c0_i32_1 = arith.constant 0 : i32
    return %arg0, %c0_i32, %c0_i32_0 : i32, i32, i32
  }
  func.func @transform_3(%arg0: i32, %arg1: i32) -> (i32, i32, i32) {
    %c0_i32 = arith.constant 0 : i32
    %c0_i32_0 = arith.constant 0 : i32
    %c0_i32_1 = arith.constant 0 : i32
    return %arg0, %c0_i32, %c0_i32_0 : i32, i32, i32
  }
}

module attributes {stable_mosaic.version = 11 : i64} {
  func.func @conv_bn_relu_kernel(%arg0: i32, %arg1: memref<4x128xf32, #tpu.memory_space<vmem>>, %arg2: memref<3x8x4xf32, #tpu.memory_space<vmem>>, %arg3: memref<2x8x1xf32, #tpu.memory_space<vmem>>, %arg4: memref<2x8x1xf32, #tpu.memory_space<vmem>>, %arg5: memref<8x1xf32, #tpu.memory_space<vmem>>, %arg6: memref<8x1xf32, #tpu.memory_space<vmem>>, %arg7: memref<8x128xf32, #tpu.memory_space<vmem>>) attributes {dimension_semantics = [#tpu.dimension_semantics<parallel>], iteration_bounds = array<i64: 2>, scalar_prefetch = 0 : i64, scratch_operands = 0 : i64, tpu.core_type = #tpu.core_type<tc>, window_params = [{transform_indices = @transform_0, window_bounds = array<i64: 4, 128>}, {pipeline_mode = #tpu.pipeline_mode<synchronous>, transform_indices = @transform_1, window_bounds = array<i64: 3, 8, 4>}, {pipeline_mode = #tpu.pipeline_mode<synchronous>, transform_indices = @transform_2, window_bounds = array<i64: 2, 8, 1>}, {pipeline_mode = #tpu.pipeline_mode<synchronous>, transform_indices = @transform_3, window_bounds = array<i64: 2, 8, 1>}, {pipeline_mode = #tpu.pipeline_mode<synchronous>, transform_indices = @transform_4, window_bounds = array<i64: 8, 1>}, {pipeline_mode = #tpu.pipeline_mode<synchronous>, transform_indices = @transform_5, window_bounds = array<i64: 8, 1>}, {transform_indices = @transform_6, window_bounds = array<i64: 8, 128>}]} {
    %c0 = arith.constant 0 : index
    %c0_0 = arith.constant 0 : index
    %0 = vector.load %arg1[%c0, %c0_0] : memref<4x128xf32, #tpu.memory_space<vmem>>, vector<4x128xf32>
    %1 = tpu.iota {dimensions = array<i32: 1>} : vector<1x128xi32>
    %c16_i32 = arith.constant 16 : i32
    %c0_i32 = arith.constant 0 : i32
    %2 = arith.cmpi eq, %c16_i32, %c0_i32 : i32
    %c1_i32 = arith.constant 1 : i32
    %3 = arith.select %2, %c1_i32, %c16_i32 : i32
    %4 = vector.broadcast %3 : i32 to vector<1x128xi32>
    %5 = arith.remsi %1, %4 : vector<1x128xi32>
    %c0_i32_1 = arith.constant 0 : i32
    %6 = vector.broadcast %c0_i32_1 : i32 to vector<1x128xi32>
    %7 = arith.cmpi ne, %5, %6 : vector<1x128xi32>
    %c0_i32_2 = arith.constant 0 : i32
    %8 = vector.broadcast %c0_i32_2 : i32 to vector<1x128xi32>
    %9 = arith.cmpi slt, %5, %8 : vector<1x128xi32>
    %c0_i32_3 = arith.constant 0 : i32
    %10 = arith.cmpi slt, %3, %c0_i32_3 : i32
    %11 = vector.broadcast %10 : i1 to vector<1x128xi1>
    %12 = vector.broadcast %11 : vector<1x128xi1> to vector<1x128xi1>
    %13 = arith.xori %9, %12 : vector<1x128xi1>
    %14 = arith.andi %13, %7 : vector<1x128xi1>
    %15 = vector.broadcast %3 : i32 to vector<1x128xi32>
    %16 = arith.addi %5, %15 : vector<1x128xi32>
    %17 = arith.select %14, %16, %5 : vector<1x128xi1>, vector<1x128xi32>
    %cst = arith.constant 0.000000e+00 : f32
    %18 = vector.broadcast %cst : f32 to vector<4x1xf32>
    %cst_4 = arith.constant 0.000000e+00 : f32
    %19 = vector.broadcast %cst_4 : f32 to vector<4x1xf32>
    %20 = tpu.concatenate %18, %0, %19 in 1 : vector<4x1xf32>, vector<4x128xf32>, vector<4x1xf32> -> vector<4x130xf32>
    %21 = vector.extract_strided_slice %20 {offsets = [0, 0], sizes = [4, 128], strides = [1, 1]} : vector<4x130xf32> to vector<4x128xf32>
    %c-1_i32 = arith.constant -1 : i32
    %22 = vector.broadcast %c-1_i32 : i32 to vector<1x128xi32>
    %23 = arith.addi %17, %22 : vector<1x128xi32>
    %c0_i32_5 = arith.constant 0 : i32
    %24 = vector.broadcast %c0_i32_5 : i32 to vector<1x128xi32>
    %25 = arith.cmpi sge, %23, %24 : vector<1x128xi32>
    %c-1_i32_6 = arith.constant -1 : i32
    %26 = vector.broadcast %c-1_i32_6 : i32 to vector<1x128xi32>
    %27 = arith.addi %17, %26 : vector<1x128xi32>
    %c16_i32_7 = arith.constant 16 : i32
    %28 = vector.broadcast %c16_i32_7 : i32 to vector<1x128xi32>
    %29 = arith.cmpi slt, %27, %28 : vector<1x128xi32>
    %30 = arith.andi %25, %29 : vector<1x128xi1>
    %cst_8 = arith.constant 0.000000e+00 : f32
    %31 = vector.shape_cast %30 : vector<1x128xi1> to vector<1x128xi1>
    %32 = vector.broadcast %31 : vector<1x128xi1> to vector<4x128xi1>
    %33 = vector.broadcast %cst_8 : f32 to vector<4x128xf32>
    %34 = arith.select %32, %21, %33 : vector<4x128xi1>, vector<4x128xf32>
    %c0_9 = arith.constant 0 : index
    %c0_10 = arith.constant 0 : index
    %c0_11 = arith.constant 0 : index
    %35 = vector.load %arg2[%c0_9, %c0_10, %c0_11] : memref<3x8x4xf32, #tpu.memory_space<vmem>>, vector<1x8x4xf32>
    %36 = vector.shape_cast %35 : vector<1x8x4xf32> to vector<8x4xf32>
    %cst_12 = arith.constant dense<0.000000e+00> : vector<8x128xf32>
    %37 = tpu.matmul %36, %34, %cst_12 {dimension_numbers = #tpu.dot_dimension_numbers<[1], [0], [0], [1], [0, 0, 1, 1], [], []>} : vector<8x4xf32>, vector<4x128xf32>, vector<8x128xf32> -> vector<8x128xf32>
    %38 = vector.extract_strided_slice %20 {offsets = [0, 1], sizes = [4, 128], strides = [1, 1]} : vector<4x130xf32> to vector<4x128xf32>
    %c1 = arith.constant 1 : index
    %c0_13 = arith.constant 0 : index
    %c0_14 = arith.constant 0 : index
    %39 = vector.load %arg2[%c1, %c0_13, %c0_14] : memref<3x8x4xf32, #tpu.memory_space<vmem>>, vector<1x8x4xf32>
    %40 = vector.shape_cast %39 : vector<1x8x4xf32> to vector<8x4xf32>
    %cst_15 = arith.constant dense<0.000000e+00> : vector<8x128xf32>
    %41 = tpu.matmul %40, %38, %cst_15 {dimension_numbers = #tpu.dot_dimension_numbers<[1], [0], [0], [1], [0, 0, 1, 1], [], []>} : vector<8x4xf32>, vector<4x128xf32>, vector<8x128xf32> -> vector<8x128xf32>
    %42 = arith.addf %37, %41 : vector<8x128xf32>
    %43 = vector.extract_strided_slice %20 {offsets = [0, 2], sizes = [4, 128], strides = [1, 1]} : vector<4x130xf32> to vector<4x128xf32>
    %c1_i32_16 = arith.constant 1 : i32
    %44 = vector.broadcast %c1_i32_16 : i32 to vector<1x128xi32>
    %45 = arith.addi %17, %44 : vector<1x128xi32>
    %c0_i32_17 = arith.constant 0 : i32
    %46 = vector.broadcast %c0_i32_17 : i32 to vector<1x128xi32>
    %47 = arith.cmpi sge, %45, %46 : vector<1x128xi32>
    %c1_i32_18 = arith.constant 1 : i32
    %48 = vector.broadcast %c1_i32_18 : i32 to vector<1x128xi32>
    %49 = arith.addi %17, %48 : vector<1x128xi32>
    %c16_i32_19 = arith.constant 16 : i32
    %50 = vector.broadcast %c16_i32_19 : i32 to vector<1x128xi32>
    %51 = arith.cmpi slt, %49, %50 : vector<1x128xi32>
    %52 = arith.andi %47, %51 : vector<1x128xi1>
    %cst_20 = arith.constant 0.000000e+00 : f32
    %53 = vector.shape_cast %52 : vector<1x128xi1> to vector<1x128xi1>
    %54 = vector.broadcast %53 : vector<1x128xi1> to vector<4x128xi1>
    %55 = vector.broadcast %cst_20 : f32 to vector<4x128xf32>
    %56 = arith.select %54, %43, %55 : vector<4x128xi1>, vector<4x128xf32>
    %c2 = arith.constant 2 : index
    %c0_21 = arith.constant 0 : index
    %c0_22 = arith.constant 0 : index
    %57 = vector.load %arg2[%c2, %c0_21, %c0_22] : memref<3x8x4xf32, #tpu.memory_space<vmem>>, vector<1x8x4xf32>
    %58 = vector.shape_cast %57 : vector<1x8x4xf32> to vector<8x4xf32>
    %cst_23 = arith.constant dense<0.000000e+00> : vector<8x128xf32>
    %59 = tpu.matmul %58, %56, %cst_23 {dimension_numbers = #tpu.dot_dimension_numbers<[1], [0], [0], [1], [0, 0, 1, 1], [], []>} : vector<8x4xf32>, vector<4x128xf32>, vector<8x128xf32> -> vector<8x128xf32>
    %60 = arith.addf %42, %59 : vector<8x128xf32>
    %c0_24 = arith.constant 0 : index
    %c0_25 = arith.constant 0 : index
    %c0_26 = arith.constant 0 : index
    %61 = vector.load %arg3[%c0_24, %c0_25, %c0_26] : memref<2x8x1xf32, #tpu.memory_space<vmem>>, vector<1x8x1xf32>
    %62 = vector.shape_cast %61 : vector<1x8x1xf32> to vector<8x1xf32>
    %c0_27 = arith.constant 0 : index
    %c0_28 = arith.constant 0 : index
    %c0_29 = arith.constant 0 : index
    %63 = vector.load %arg4[%c0_27, %c0_28, %c0_29] : memref<2x8x1xf32, #tpu.memory_space<vmem>>, vector<1x8x1xf32>
    %64 = vector.shape_cast %63 : vector<1x8x1xf32> to vector<8x1xf32>
    %c1_30 = arith.constant 1 : index
    %c0_31 = arith.constant 0 : index
    %c0_32 = arith.constant 0 : index
    %65 = vector.load %arg3[%c1_30, %c0_31, %c0_32] : memref<2x8x1xf32, #tpu.memory_space<vmem>>, vector<1x8x1xf32>
    %66 = vector.shape_cast %65 : vector<1x8x1xf32> to vector<8x1xf32>
    %67 = arith.addf %62, %66 : vector<8x1xf32>
    %c1_33 = arith.constant 1 : index
    %c0_34 = arith.constant 0 : index
    %c0_35 = arith.constant 0 : index
    %68 = vector.load %arg4[%c1_33, %c0_34, %c0_35] : memref<2x8x1xf32, #tpu.memory_space<vmem>>, vector<1x8x1xf32>
    %69 = vector.shape_cast %68 : vector<1x8x1xf32> to vector<8x1xf32>
    %70 = arith.addf %64, %69 : vector<8x1xf32>
    %cst_36 = arith.constant 3.906250e-03 : f32
    %71 = vector.broadcast %cst_36 : f32 to vector<8x1xf32>
    %72 = arith.mulf %67, %71 : vector<8x1xf32>
    %cst_37 = arith.constant 3.906250e-03 : f32
    %73 = vector.broadcast %cst_37 : f32 to vector<8x1xf32>
    %74 = arith.mulf %70, %73 : vector<8x1xf32>
    %75 = arith.mulf %72, %72 : vector<8x1xf32>
    %76 = arith.subf %74, %75 : vector<8x1xf32>
    %cst_38 = arith.constant 0.000000e+00 : f32
    %77 = vector.broadcast %cst_38 : f32 to vector<8x1xf32>
    %78 = arith.maximumf %76, %77 : vector<8x1xf32>
    %c0_39 = arith.constant 0 : index
    %c0_40 = arith.constant 0 : index
    %79 = vector.load %arg5[%c0_39, %c0_40] : memref<8x1xf32, #tpu.memory_space<vmem>>, vector<8x1xf32>
    %cst_41 = arith.constant 9.99999974E-6 : f32
    %80 = vector.broadcast %cst_41 : f32 to vector<8x1xf32>
    %81 = arith.addf %78, %80 : vector<8x1xf32>
    %82 = math.rsqrt %81 : vector<8x1xf32>
    %83 = arith.mulf %79, %82 : vector<8x1xf32>
    %c0_42 = arith.constant 0 : index
    %c0_43 = arith.constant 0 : index
    %84 = vector.load %arg6[%c0_42, %c0_43] : memref<8x1xf32, #tpu.memory_space<vmem>>, vector<8x1xf32>
    %85 = arith.mulf %72, %83 : vector<8x1xf32>
    %86 = arith.subf %84, %85 : vector<8x1xf32>
    %87 = vector.broadcast %83 : vector<8x1xf32> to vector<8x128xf32>
    %88 = arith.mulf %60, %87 : vector<8x128xf32>
    %89 = vector.broadcast %86 : vector<8x1xf32> to vector<8x128xf32>
    %90 = arith.addf %88, %89 : vector<8x128xf32>
    %cst_44 = arith.constant 0.000000e+00 : f32
    %91 = vector.broadcast %cst_44 : f32 to vector<8x128xf32>
    %92 = arith.maximumf %90, %91 : vector<8x128xf32>
    %c0_45 = arith.constant 0 : index
    %c0_46 = arith.constant 0 : index
    %93 = vector.load %arg7[%c0_45, %c0_46] : memref<8x128xf32, #tpu.memory_space<vmem>>, vector<8x128xf32>
    tpu.vector_store %arg7[%c0_45, %c0_46], %92 {strides = array<i32>} : memref<8x128xf32, #tpu.memory_space<vmem>>, vector<8x128xf32>,
    return
  }
  func.func @transform_0(%arg0: i32) -> (i32, i32) {
    %c0_i32 = arith.constant 0 : i32
    %c0_i32_0 = arith.constant 0 : i32
    return %c0_i32, %arg0 : i32, i32
  }
  func.func @transform_1(%arg0: i32) -> (i32, i32, i32) {
    %c0_i32 = arith.constant 0 : i32
    %c0_i32_0 = arith.constant 0 : i32
    %c0_i32_1 = arith.constant 0 : i32
    %c0_i32_2 = arith.constant 0 : i32
    return %c0_i32, %c0_i32_0, %c0_i32_1 : i32, i32, i32
  }
  func.func @transform_2(%arg0: i32) -> (i32, i32, i32) {
    %c0_i32 = arith.constant 0 : i32
    %c0_i32_0 = arith.constant 0 : i32
    %c0_i32_1 = arith.constant 0 : i32
    %c0_i32_2 = arith.constant 0 : i32
    return %c0_i32, %c0_i32_0, %c0_i32_1 : i32, i32, i32
  }
  func.func @transform_3(%arg0: i32) -> (i32, i32, i32) {
    %c0_i32 = arith.constant 0 : i32
    %c0_i32_0 = arith.constant 0 : i32
    %c0_i32_1 = arith.constant 0 : i32
    %c0_i32_2 = arith.constant 0 : i32
    return %c0_i32, %c0_i32_0, %c0_i32_1 : i32, i32, i32
  }
  func.func @transform_4(%arg0: i32) -> (i32, i32) {
    %c0_i32 = arith.constant 0 : i32
    %c0_i32_0 = arith.constant 0 : i32
    %c0_i32_1 = arith.constant 0 : i32
    return %c0_i32, %c0_i32_0 : i32, i32
  }
  func.func @transform_5(%arg0: i32) -> (i32, i32) {
    %c0_i32 = arith.constant 0 : i32
    %c0_i32_0 = arith.constant 0 : i32
    %c0_i32_1 = arith.constant 0 : i32
    return %c0_i32, %c0_i32_0 : i32, i32
  }
  func.func @transform_6(%arg0: i32) -> (i32, i32) {
    %c0_i32 = arith.constant 0 : i32
    %c0_i32_0 = arith.constant 0 : i32
    return %c0_i32, %arg0 : i32, i32
  }
}

</mosaic_0001>

<llo_original>
// kernel: cnn_block.2
$region0: #{cnn_block.2}
  #allocation0 [shape = 'u32[]', space=smem, size = 0x4, offset = 0x4, fixed_abs, tag = 'smem constant byte address 0x4 - core index']
  #allocation1 [shape = 'u32[144,128]{1,0:T(1,128)}', space=vmem, size = 0x12000, scoped, tag = 'internal scratch']
  #allocation2 [shape = 'f32[8,128]{1,0:T(8,128)}', space=vmem, size = 0x1000, scoped, tag = 'scratch operand']
  #allocation3 [shape = 'f32[8,128]{1,0:T(8,128)}', space=vmem, size = 0x1000, scoped, tag = 'scratch operand']
  %s0 = inlined_call_operand.vmem [shape: f32[4,256], index: 0, kind: input, shape index: {}]
  %s1 = inlined_call_operand.vmem [shape: f32[3,8,4], index: 1, kind: input, shape index: {}]
  %s2 = inlined_call_operand.vmem [shape: f32[2,8,1], index: 2, kind: output, shape index: {0}]
  %s3 = inlined_call_operand.vmem [shape: f32[2,8,1], index: 3, kind: output, shape index: {1}]
  %4 = xla_tuple %s2, %s3
  %s5 = sld [smem:[#allocation0]]
  $region57: #{cnn_block.2} parent=0
    _
  %s7 = ssub.s32 1, %s5
  %s8 = scalar_select 0, %s7, %s5
  loop: start=0, step=1, limit=4
  $region2: #{cnn_block.2} parent=0 // loop_pre_header
    _
  $region3: #{cnn_block.2} parent=0 // loop_header
    %s10 = sphi 0, %s14
    %p11 = scmp.ge.s32.totalorder %s10, 4
    %s17 = sphi 0, %s29
    %s18 = sphi 0, %s25
    %s19 = sphi 0, %s17
    %s20 = sphi 0, %s18
    %s21 = sphi 0, %s19
    %s22 = sphi 0, %s20
    %s34 = sphi 0, %s36
    %s37 = sphi 0, %s34
    %s38 = sphi 0, %s37
    %s54 = sphi 0, %s38
    %s58 = sphi 0, %s58
    %s60 = sphi 0, %s58
    %s61 = sphi 0, %s60
    %s75 = sphi 0, %s61
    %s81 = sphi 0, %s83
    %s84 = sphi 0, %s81
    %s85 = sphi 0, %s84
    %s101 = sphi 0, %s85
    %s107 = sphi 0, %s109
    %s110 = sphi 0, %s107
    %s111 = sphi 0, %s110
    %s127 = sphi 0, %s111
  $region4: #{cnn_block.2} parent=0 // loop_header_branch
    %13 = sbr.rel (%p11) target = $region8
  $region5: #{cnn_block.2} parent=0 // loop_body
    %s15 = ssub.s32 %s10, 1
    %s16 = ssub.s32 %s10, 2
    %s23 = sadd.s32 1, %s18
    %p24 = scmp.ge.s32.totalorder %s23, 1
    %s25 = scalar_select %p24, 0, %s23
    %s26 = sadd.s32 1, %s17
    %s27 = scalar_select %p24, %s26, %s17
    %p28 = scmp.ge.s32.totalorder %s27, 2
    %s29 = scalar_select %p28, 0, %s27
    %s30 = sadd.s32 %s17, %s18
    %s31 = sadd.s32 %s29, %s25
    %s32 = ssub.s32 %s30, %s31
    %p33 = scmp.eq.s32.totalorder %s32, 0
    %s35 = sadd.s32 %s34, 1
    %s36 = scalar_select %p33, %s34, %s35
    %p39 = pneg %p33
    %p40 = scmp.eq.s32.totalorder %s10, 1
    %p41 = por %p39, %p40
    %p42 = scmp.ne.s32.totalorder %s34, %s37
    %p43 = scmp.eq.s32.totalorder %s10, 0
    %p44 = por %p42, %p43
    %p45 = scmp.ne.s32.totalorder %s34, %s37
    %p46 = scmp.eq.s32.totalorder %s15, 1
    %p47 = por %p45, %p46
    %p48 = scmp.ne.s32.totalorder %s37, %s38
    %p49 = scmp.eq.s32.totalorder %s15, 0
    %p50 = por %p48, %p49
    %p51 = scmp.ne.s32.totalorder %s37, %s38
    %p52 = scmp.eq.s32.totalorder %s16, 1
    %p53 = por %p51, %p52
    %p55 = scmp.ne.s32.totalorder %s38, %s54
    %p56 = scmp.eq.s32.totalorder %s16, 0
    %p57 = por %p55, %p56
    %s59 = sadd.s32 %s58, 1
    %p62 = scmp.eq.s32.totalorder %s10, 1
    %p63 = scmp.ne.s32.totalorder %s58, %s60
    %p64 = scmp.eq.s32.totalorder %s10, 0
    %p65 = por %p63, %p64
    %p66 = scmp.ne.s32.totalorder %s58, %s60
    %p67 = scmp.eq.s32.totalorder %s15, 1
    %p68 = por %p66, %p67
    %p69 = scmp.ne.s32.totalorder %s60, %s61
    %p70 = scmp.eq.s32.totalorder %s15, 0
    %p71 = por %p69, %p70
    %p72 = scmp.ne.s32.totalorder %s60, %s61
    %p73 = scmp.eq.s32.totalorder %s16, 1
    %p74 = por %p72, %p73
    %p76 = scmp.ne.s32.totalorder %s61, %s75
    %p77 = scmp.eq.s32.totalorder %s16, 0
    %p78 = por %p76, %p77
    %s79 = ssub.s32 %s17, %s29
    %p80 = scmp.eq.s32.totalorder %s79, 0
    %s82 = sadd.s32 %s81, 1
    %s83 = scalar_select %p80, %s81, %s82
    %p86 = pneg %p80
    %p87 = scmp.eq.s32.totalorder %s10, 1
    %p88 = por %p86, %p87
    %p89 = scmp.ne.s32.totalorder %s81, %s84
    %p90 = scmp.eq.s32.totalorder %s10, 0
    %p91 = por %p89, %p90
    %p92 = scmp.ne.s32.totalorder %s81, %s84
    %p93 = scmp.eq.s32.totalorder %s15, 1
    %p94 = por %p92, %p93
    %p95 = scmp.ne.s32.totalorder %s84, %s85
    %p96 = scmp.eq.s32.totalorder %s15, 0
    %p97 = por %p95, %p96
    %p98 = scmp.ne.s32.totalorder %s84, %s85
    %p99 = scmp.eq.s32.totalorder %s16, 1
    %p100 = por %p98, %p99
    %p102 = scmp.ne.s32.totalorder %s85, %s101
    %p103 = scmp.eq.s32.totalorder %s16, 0
    %p104 = por %p102, %p103
    %s105 = ssub.s32 %s17, %s29
    %p106 = scmp.eq.s32.totalorder %s105, 0
    %s108 = sadd.s32 %s107, 1
    %s109 = scalar_select %p106, %s107, %s108
    %p112 = pneg %p106
    %p113 = scmp.eq.s32.totalorder %s10, 1
    %p114 = por %p112, %p113
    %p115 = scmp.ne.s32.totalorder %s107, %s110
    %p116 = scmp.eq.s32.totalorder %s10, 0
    %p117 = por %p115, %p116
    %p118 = scmp.ne.s32.totalorder %s107, %s110
    %p119 = scmp.eq.s32.totalorder %s15, 1
    %p120 = por %p118, %p119
    %p121 = scmp.ne.s32.totalorder %s110, %s111
    %p122 = scmp.eq.s32.totalorder %s15, 0
    %p123 = por %p121, %p122
    %p124 = scmp.ne.s32.totalorder %s110, %s111
    %p125 = scmp.eq.s32.totalorder %s16, 1
    %p126 = por %p124, %p125
    %p128 = scmp.ne.s32.totalorder %s111, %s127
    %p129 = scmp.eq.s32.totalorder %s16, 0
    %p130 = por %p128, %p129
    %p131 = scmp.le.s32.totalorder 1, %s10
    %p132 = scmp.lt.s32.totalorder %s10, 3
    %p133 = pnand %p131, %p132
    %p134 = pneg %p133
    // Predicated region
    $region9: #{cnn_block.2} parent=5 // pred_check
      _
    $region10: #{cnn_block.2} parent=5 // pred_check_branch
      %136 = sbr.rel (%p133) target = $region12
    $region11: #{cnn_block.2} parent=5 // pred_region
      %s137 = ssub.s32 %s10, 1
      // Predicated region
      $region13: #{cnn_block.2} parent=11 // pred_check
        %p138 = pneg %p71
      $region14: #{cnn_block.2} parent=11 // pred_check_branch
        %140 = sbr.rel (%p138) target = $region16
      $region15: #{cnn_block.2} parent=11 // pred_region
        _
      $region16: #{cnn_block.2} parent=11 // pred_fallthru
        _
    $region12: #{cnn_block.2} parent=5 // pred_fallthru
      _
    %p141 = scmp.lt.s32.totalorder %s10, 2
    // Predicated region
    $region17: #{cnn_block.2} parent=5 // pred_check
      %p142 = pneg %p141
    $region18: #{cnn_block.2} parent=5 // pred_check_branch
      %144 = sbr.rel (%p142) target = $region20
    $region19: #{cnn_block.2} parent=5 // pred_region
      // Predicated region
      $region21: #{cnn_block.2} parent=19 // pred_check
        %p145 = pneg %p44
      $region22: #{cnn_block.2} parent=19 // pred_check_branch
        %147 = sbr.rel (%p145) target = $region24
      $region23: #{cnn_block.2} parent=19 // pred_region
        %s148 = sadd.s32 %s17, %s18
        %p149 = scmp.lt.s32.totalorder %s148, 1
        %s150 = scalar_select %p149, %s148, 1
        %s151 = smul.addr %s150, 4
        %s152 = scalar_lea.vmem %s0, %s151
        %s153 = sadd.s32 %s17, %s18
      $region24: #{cnn_block.2} parent=19 // pred_fallthru
        _
    $region20: #{cnn_block.2} parent=5 // pred_fallthru
      _
    %p154 = scmp.le.s32.totalorder 1, %s10
    %p155 = scmp.lt.s32.totalorder %s10, 3
    %p156 = pnand %p154, %p155
    %p157 = pneg %p156
    // Predicated region
    $region25: #{cnn_block.2} parent=5 // pred_check
      _
    $region26: #{cnn_block.2} parent=5 // pred_check_branch
      %159 = sbr.rel (%p156) target = $region28
    $region27: #{cnn_block.2} parent=5 // pred_region
      %s160 = ssub.s32 %s10, 1
      %s161 = sadd.s32 %s19, %s20
      %p162 = scmp.lt.s32.totalorder %s161, 1
      %s163 = scalar_select %p162, %s161, 1
      %s164 = smul.addr %s163, 4
      %s165 = scalar_lea.vmem %s0, %s164
      %p166 = pneg %p50
      %p167 = pneg %p47
      %p168 = pneg %p71
      %p169 = pneg %p68
      %p170 = pneg %p97
      %p171 = pneg %p94
      %p172 = scmp.lt.s32.totalorder %s19, 1
      %s173 = scalar_select %p172, %s19, 1
      %s174 = smul.addr %s173, 8
      %s175 = scalar_lea.vmem %s2, %s174
      %p176 = pneg %p123
      %p177 = pneg %p120
      %p178 = scmp.lt.s32.totalorder %s19, 1
      %s179 = scalar_select %p178, %s19, 1
      %s180 = smul.addr %s179, 8
      %s181 = scalar_lea.vmem %s3, %s180
      %s182 = sadd.s32 %s19, %s20
      %p183 = scmp.lt.s32.totalorder %s182, 1
      %s184 = scalar_select %p183, %s182, 1
      %s185 = smul.addr %s184, 4
      %s186 = scalar_lea.vmem %s0, %s185
      %s187 = sadd.s32 %s19, %s20
      %p188 = scmp.lt.s32.totalorder %s19, 1
      %s189 = scalar_select %p188, %s19, 1
      %s190 = smul.addr %s189, 8
      %s191 = scalar_lea.vmem %s2, %s190
      %p192 = scmp.lt.s32.totalorder %s19, 1
      %s193 = scalar_select %p192, %s19, 1
      %s194 = smul.addr %s193, 8
      %s195 = scalar_lea.vmem %s3, %s194
      %p196 = scmp.eq.s32.totalorder %s20, 0
      // Predicated region
      $region29: #{cnn_block.2} parent=27 // pred_check
        %p197 = pneg %p196
      $region30: #{cnn_block.2} parent=27 // pred_check_branch
        %199 = sbr.rel (%p197) target = $region32
      $region31: #{cnn_block.2} parent=27 // pred_region
        %200 = vst [vmem:[#allocation2] sm:$0xff] 0.0
        %201 = vst [vmem:[#allocation3] sm:$0xff] 0.0
      $region32: #{cnn_block.2} parent=27 // pred_fallthru
        _
      %v202 = vld [vmem:[%s186] sm:$0xf]
      %v203 = vlaneseq
      %v204 = vand.u32 %v203, 127
      %vm205 = vcmp.lt.s32.totalorder %v204, 0
      %v206 = vsub.s32 0, %v204
      %v207 = vsel %vm205, %v206, %v204
      %v208 = vshrl.u32 %v207, 4
      %v209 = vand.u32 %v207, 15
      %v210 = vsub.s32 0, %v209
      %v211 = vsel %vm205, %v210, %v209
      %vm212 = vcmp.ne.s32.totalorder %v211, 0
      %vm213 = vcmp.lt.s32.totalorder %v211, 0
      %vm214 = vmand %vm213, %vm212
      %v215 = vadd.s32 %v211, 16
      %v216 = vsel %vm214, %v215, %v211
      %218 = vrot.lane.b32.xlu0 %v202, 1
      %v219 = vpop.permute.xlu0 %218
      %vm221 = vcmask 7168
      %v222 = vsel %vm221, 0.0, %v219
      %v223 = vsel %vm221, %v219, 0.0
      %v224 = vadd.s32 %v216, 4294967295
      %vm225 = vcmp.ge.s32.totalorder %v224, 0
      %vm226 = vcmp.lt.s32.totalorder %v224, 16
      %vm227 = vmand %vm225, %vm226
      %v228 = vsel %vm227, 1, 0
      %vm229 = vcmp.eq.s32.totalorder %v228, 1
      %v230 = vsel %vm229, %v222, 0.0
      %v231 = vld [vmem:[%s1] sm:$0xff]
      %s232 = scalar_lea.vmem %s1, 8
      %v233 = vld [vmem:[%s232] sm:$0xff]
      %236 = vrot.lane.b32.xlu0 %v222, 127
      %v237 = vpop.permute.xlu0 %236
      %238 = vrot.lane.b32.xlu0 %v223, 127
      %v239 = vpop.permute.xlu0 %238
      %vm240 = vcmask 1039360
      %v241 = vsel %vm240, %v237, %v239
      %vm242 = vcmask 31744
      %v244 = vsel %vm242, %v233, 0
      %vm246 = vcmask 1043456
      %v247 = vsel %vm246, %v241, 0
      %249 = vmatprep.subr.mxu0 0.0
      %250 = vmatpush1.msra.mxu0 %v247
      %251 = vmatprep.subr.mxu0 0.0
      %252 = vmatpush1.msra.mxu0 0.0
      %253 = vmatprep.subr.mxu0 0.0
      %254 = vmatpush1.msra.mxu0 0.0
      %255 = vmatprep.subr.mxu0 0.0
      %256 = vmatpush1.msra.mxu0 0.0
      %257 = vmatprep.subr.mxu0 0.0
      %258 = vmatpush1.msra.mxu0 0.0
      %259 = vmatprep.subr.mxu0 0.0
      %260 = vmatpush1.msra.mxu0 0.0
      %261 = vmatprep.subr.mxu0 0.0
      %262 = vmatpush1.msra.mxu0 0.0
      %263 = vmatprep.subr.mxu0 0.0
      %264 = vmatpush1.msra.mxu0 0.0
      %265 = vmatprep.subr.mxu0 0.0
      %266 = vmatpush1.msra.mxu0 0.0
      %267 = vmatprep.subr.mxu0 0.0
      %268 = vmatpush1.msra.mxu0 0.0
      %269 = vmatprep.subr.mxu0 0.0
      %270 = vmatpush1.msra.mxu0 0.0
      %271 = vmatprep.subr.mxu0 0.0
      %272 = vmatpush1.msra.mxu0 0.0
      %273 = vmatprep.subr.mxu0 0.0
      %274 = vmatpush1.msra.mxu0 0.0
      %275 = vmatprep.subr.mxu0 0.0
      %276 = vmatpush1.msra.mxu0 0.0
      %277 = vmatprep.subr.mxu0 0.0
      %278 = vmatpush1.msra.mxu0 0.0
      %279 = vmatprep.subr.mxu0 0.0
      %280 = vmatpush1.msra.mxu0 0.0
      %281 = vmatprep.subr.mxu0 0.0
      %282 = vmatpush1.msra.mxu0 0.0
      %283 = vmatprep.subr.mxu0 0.0
      %284 = vmatpush1.msra.mxu0 0.0
      %285 = vmatprep.subr.mxu0 0.0
      %286 = vmatpush1.msra.mxu0 0.0
      %287 = vmatprep.subr.mxu0 0.0
      %288 = vmatpush1.msra.mxu0 0.0
      %289 = vmatprep.subr.mxu0 0.0
      %290 = vmatpush1.msra.mxu0 0.0
      %291 = vmatprep.subr.mxu0 0.0
      %292 = vmatpush1.msra.mxu0 0.0
      %293 = vmatprep.subr.mxu0 0.0
      %294 = vmatpush1.msra.mxu0 0.0
      %295 = vmatprep.subr.mxu0 0.0
      %296 = vmatpush1.msra.mxu0 0.0
      %297 = vmatprep.subr.mxu0 0.0
      %298 = vmatpush1.msra.mxu0 0.0
      %299 = vmatprep.subr.mxu0 0.0
      %300 = vmatpush1.msra.mxu0 0.0
      %301 = vmatprep.subr.mxu0 0.0
      %302 = vmatpush1.msra.mxu0 0.0
      %303 = vmatprep.subr.mxu0 0.0
      %304 = vmatpush1.msra.mxu0 0.0
      %305 = vmatprep.subr.mxu0 0.0
      %306 = vmatpush1.msra.mxu0 0.0
      %307 = vmatprep.subr.mxu0 0.0
      %308 = vmatpush1.msra.mxu0 0.0
      %309 = vmatprep.subr.mxu0 0.0
      %310 = vmatpush1.msra.mxu0 0.0
      %311 = vmatprep.subr.mxu0 0.0
      %312 = vmatpush1.msra.mxu0 0.0
      %313 = vmatprep.mubr.f32.mxu0 0.0
      %314 = vmatmul.mubr.f32.gmra.mrb[0].mxu0 %v244
      %v315 = vpop.f32.mrb[0].mxu0
      %v316 = vadd.f32 0.0, %v315
      %v317 = vpop.f32.mrb[0].mxu0
      %318 = vdwg.mxu0
      %v320 = vsel %vm242, %v231, 0
      %v323 = vsel %vm246, %v230, 0
      %325 = vmatprep.subr.mxu0 0.0
      %326 = vmatpush1.msra.mxu0 %v323
      %327 = vmatprep.subr.mxu0 0.0
      %328 = vmatpush1.msra.mxu0 0.0
      %329 = vmatprep.subr.mxu0 0.0
      %330 = vmatpush1.msra.mxu0 0.0
      %331 = vmatprep.subr.mxu0 0.0
      %332 = vmatpush1.msra.mxu0 0.0
      %333 = vmatprep.subr.mxu0 0.0
      %334 = vmatpush1.msra.mxu0 0.0
      %335 = vmatprep.subr.mxu0 0.0
      %336 = vmatpush1.msra.mxu0 0.0
      %337 = vmatprep.subr.mxu0 0.0
      %338 = vmatpush1.msra.mxu0 0.0
      %339 = vmatprep.subr.mxu0 0.0
      %340 = vmatpush1.msra.mxu0 0.0
      %341 = vmatprep.subr.mxu0 0.0
      %342 = vmatpush1.msra.mxu0 0.0
      %343 = vmatprep.subr.mxu0 0.0
      %344 = vmatpush1.msra.mxu0 0.0
      %345 = vmatprep.subr.mxu0 0.0
      %346 = vmatpush1.msra.mxu0 0.0
      %347 = vmatprep.subr.mxu0 0.0
      %348 = vmatpush1.msra.mxu0 0.0
      %349 = vmatprep.subr.mxu0 0.0
      %350 = vmatpush1.msra.mxu0 0.0
      %351 = vmatprep.subr.mxu0 0.0
      %352 = vmatpush1.msra.mxu0 0.0
      %353 = vmatprep.subr.mxu0 0.0
      %354 = vmatpush1.msra.mxu0 0.0
      %355 = vmatprep.subr.mxu0 0.0
      %356 = vmatpush1.msra.mxu0 0.0
      %357 = vmatprep.subr.mxu0 0.0
      %358 = vmatpush1.msra.mxu0 0.0
      %359 = vmatprep.subr.mxu0 0.0
      %360 = vmatpush1.msra.mxu0 0.0
      %361 = vmatprep.subr.mxu0 0.0
      %362 = vmatpush1.msra.mxu0 0.0
      %363 = vmatprep.subr.mxu0 0.0
      %364 = vmatpush1.msra.mxu0 0.0
      %365 = vmatprep.subr.mxu0 0.0
      %366 = vmatpush1.msra.mxu0 0.0
      %367 = vmatprep.subr.mxu0 0.0
      %368 = vmatpush1.msra.mxu0 0.0
      %369 = vmatprep.subr.mxu0 0.0
      %370 = vmatpush1.msra.mxu0 0.0
      %371 = vmatprep.subr.mxu0 0.0
      %372 = vmatpush1.msra.mxu0 0.0
      %373 = vmatprep.subr.mxu0 0.0
      %374 = vmatpush1.msra.mxu0 0.0
      %375 = vmatprep.subr.mxu0 0.0
      %376 = vmatpush1.msra.mxu0 0.0
      %377 = vmatprep.subr.mxu0 0.0
      %378 = vmatpush1.msra.mxu0 0.0
      %379 = vmatprep.subr.mxu0 0.0
      %380 = vmatpush1.msra.mxu0 0.0
      %381 = vmatprep.subr.mxu0 0.0
      %382 = vmatpush1.msra.mxu0 0.0
      %383 = vmatprep.subr.mxu0 0.0
      %384 = vmatpush1.msra.mxu0 0.0
      %385 = vmatprep.subr.mxu0 0.0
      %386 = vmatpush1.msra.mxu0 0.0
      %387 = vmatprep.subr.mxu0 0.0
      %388 = vmatpush1.msra.mxu0 0.0
      %389 = vmatprep.mubr.f32.mxu0 0.0
      %390 = vmatmul.mubr.f32.gmra.mrb[0].mxu0 %v320
      %v391 = vpop.f32.mrb[0].mxu0
      %v392 = vadd.f32 %v316, %v391
      %v393 = vpop.f32.mrb[0].mxu0
      %394 = vdwg.mxu0
      %v395 = vadd.s32 %v216, 1
      %vm396 = vcmp.ge.s32.totalorder %v395, 0
      %vm397 = vcmp.lt.s32.totalorder %v395, 16
      %vm398 = vmand %vm396, %vm397
      %v399 = vsel %vm398, 1, 0
      %vm400 = vcmp.eq.s32.totalorder %v399, 1
      %401 = vrot.lane.b32.xlu0 %v222, 126
      %v402 = vpop.permute.xlu0 %401
      %403 = vrot.lane.b32.xlu0 %v223, 126
      %v404 = vpop.permute.xlu0 %403
      %vm405 = vcmask 1031168
      %v406 = vsel %vm405, %v402, %v404
      %v408 = vsel %vm400, %v406, 0.0
      %s409 = scalar_lea.vmem %s1, 16
      %v410 = vld [vmem:[%s409] sm:$0xff]
      %v412 = vsel %vm242, %v410, 0
      %v415 = vsel %vm246, %v408, 0
      %417 = vmatprep.subr.mxu0 0.0
      %418 = vmatpush1.msra.mxu0 %v415
      %419 = vmatprep.subr.mxu0 0.0
      %420 = vmatpush1.msra.mxu0 0.0
      %421 = vmatprep.subr.mxu0 0.0
      %422 = vmatpush1.msra.mxu0 0.0
      %423 = vmatprep.subr.mxu0 0.0
      %424 = vmatpush1.msra.mxu0 0.0
      %425 = vmatprep.subr.mxu0 0.0
      %426 = vmatpush1.msra.mxu0 0.0
      %427 = vmatprep.subr.mxu0 0.0
      %428 = vmatpush1.msra.mxu0 0.0
      %429 = vmatprep.subr.mxu0 0.0
      %430 = vmatpush1.msra.mxu0 0.0
      %431 = vmatprep.subr.mxu0 0.0
      %432 = vmatpush1.msra.mxu0 0.0
      %433 = vmatprep.subr.mxu0 0.0
      %434 = vmatpush1.msra.mxu0 0.0
      %435 = vmatprep.subr.mxu0 0.0
      %436 = vmatpush1.msra.mxu0 0.0
      %437 = vmatprep.subr.mxu0 0.0
      %438 = vmatpush1.msra.mxu0 0.0
      %439 = vmatprep.subr.mxu0 0.0
      %440 = vmatpush1.msra.mxu0 0.0
      %441 = vmatprep.subr.mxu0 0.0
      %442 = vmatpush1.msra.mxu0 0.0
      %443 = vmatprep.subr.mxu0 0.0
      %444 = vmatpush1.msra.mxu0 0.0
      %445 = vmatprep.subr.mxu0 0.0
      %446 = vmatpush1.msra.mxu0 0.0
      %447 = vmatprep.subr.mxu0 0.0
      %448 = vmatpush1.msra.mxu0 0.0
      %449 = vmatprep.subr.mxu0 0.0
      %450 = vmatpush1.msra.mxu0 0.0
      %451 = vmatprep.subr.mxu0 0.0
      %452 = vmatpush1.msra.mxu0 0.0
      %453 = vmatprep.subr.mxu0 0.0
      %454 = vmatpush1.msra.mxu0 0.0
      %455 = vmatprep.subr.mxu0 0.0
      %456 = vmatpush1.msra.mxu0 0.0
      %457 = vmatprep.subr.mxu0 0.0
      %458 = vmatpush1.msra.mxu0 0.0
      %459 = vmatprep.subr.mxu0 0.0
      %460 = vmatpush1.msra.mxu0 0.0
      %461 = vmatprep.subr.mxu0 0.0
      %462 = vmatpush1.msra.mxu0 0.0
      %463 = vmatprep.subr.mxu0 0.0
      %464 = vmatpush1.msra.mxu0 0.0
      %465 = vmatprep.subr.mxu0 0.0
      %466 = vmatpush1.msra.mxu0 0.0
      %467 = vmatprep.subr.mxu0 0.0
      %468 = vmatpush1.msra.mxu0 0.0
      %469 = vmatprep.subr.mxu0 0.0
      %470 = vmatpush1.msra.mxu0 0.0
      %471 = vmatprep.subr.mxu0 0.0
      %472 = vmatpush1.msra.mxu0 0.0
      %473 = vmatprep.subr.mxu0 0.0
      %474 = vmatpush1.msra.mxu0 0.0
      %475 = vmatprep.subr.mxu0 0.0
      %476 = vmatpush1.msra.mxu0 0.0
      %477 = vmatprep.subr.mxu0 0.0
      %478 = vmatpush1.msra.mxu0 0.0
      %479 = vmatprep.subr.mxu0 0.0
      %480 = vmatpush1.msra.mxu0 0.0
      %481 = vmatprep.mubr.f32.mxu0 0.0
      %482 = vmatmul.mubr.f32.gmra.mrb[0].mxu0 %v412
      %v483 = vpop.f32.mrb[0].mxu0
      %v484 = vadd.f32 0.0, %v483
      %v485 = vpop.f32.mrb[0].mxu0
      %486 = vdwg.mxu0
      %v487 = vadd.f32 %v392, %v484
      %v488 = vld [vmem:[#allocation2] sm:$0xff]
      %v489 = vadd.f32 %v488, %v487
      %490 = vst [vmem:[#allocation2] sm:$0xff] %v489
      %v491 = vld [vmem:[#allocation3] sm:$0xff]
      %v492 = vmul.f32 %v487, %v487
      %v493 = vadd.f32 %v491, %v492
      %494 = vst [vmem:[#allocation3] sm:$0xff] %v493
      // Predicated region
      $region33: #{cnn_block.2} parent=27 // pred_check
        %p495 = pneg %p196
      $region34: #{cnn_block.2} parent=27 // pred_check_branch
        %497 = sbr.rel (%p495) target = $region36
      $region35: #{cnn_block.2} parent=27 // pred_region
        %v498 = vld [vmem:[#allocation2] sm:$0xff]
        %499 = vadd.xlane.f32.xlu0 %v498
        %v500 = vpop.xlane.xlu0 %499
        %501 = vst.msk [vmem:[%s191] sm:$0xff] %vm221, %v500
        %v502 = vld [vmem:[#allocation3] sm:$0xff]
        %503 = vadd.xlane.f32.xlu0 %v502
        %v504 = vpop.xlane.xlu0 %503
        %505 = vst.msk [vmem:[%s195] sm:$0xff] %vm221, %v504
      $region36: #{cnn_block.2} parent=27 // pred_fallthru
        _
      %p506 = scmp.lt.s32.totalorder %s19, 1
      %s507 = scalar_select %p506, %s19, 1
      %s508 = smul.addr %s507, 8
      %s509 = scalar_lea.vmem %s2, %s508
      %p510 = scmp.lt.s32.totalorder %s19, 1
      %s511 = scalar_select %p510, %s19, 1
      %s512 = smul.addr %s511, 8
      %s513 = scalar_lea.vmem %s3, %s512
      // Predicated region
      $region37: #{cnn_block.2} parent=27 // pred_check
        %p514 = pneg %p94
      $region38: #{cnn_block.2} parent=27 // pred_check_branch
        %516 = sbr.rel (%p514) target = $region40
      $region39: #{cnn_block.2} parent=27 // pred_region
        _
      $region40: #{cnn_block.2} parent=27 // pred_fallthru
        _
      // Predicated region
      $region41: #{cnn_block.2} parent=27 // pred_check
        %p517 = pneg %p120
      $region42: #{cnn_block.2} parent=27 // pred_check_branch
        %519 = sbr.rel (%p517) target = $region44
      $region43: #{cnn_block.2} parent=27 // pred_region
        _
      $region44: #{cnn_block.2} parent=27 // pred_fallthru
        _
    $region28: #{cnn_block.2} parent=5 // pred_fallthru
      _
    %p520 = scmp.le.s32.totalorder 2, %s10
    // Predicated region
    $region45: #{cnn_block.2} parent=5 // pred_check
      %p521 = pneg %p520
    $region46: #{cnn_block.2} parent=5 // pred_check_branch
      %523 = sbr.rel (%p521) target = $region48
    $region47: #{cnn_block.2} parent=5 // pred_region
      %s524 = ssub.s32 %s10, 2
      // Predicated region
      $region49: #{cnn_block.2} parent=47 // pred_check
        %p525 = pneg %p100
      $region50: #{cnn_block.2} parent=47 // pred_check_branch
        %527 = sbr.rel (%p525) target = $region52
      $region51: #{cnn_block.2} parent=47 // pred_region
        %p528 = scmp.lt.s32.totalorder %s21, 1
        %s529 = scalar_select %p528, %s21, 1
        %s530 = smul.addr %s529, 8
        %s531 = scalar_lea.vmem %s2, %s530
      $region52: #{cnn_block.2} parent=47 // pred_fallthru
        _
      // Predicated region
      $region53: #{cnn_block.2} parent=47 // pred_check
        %p532 = pneg %p126
      $region54: #{cnn_block.2} parent=47 // pred_check_branch
        %534 = sbr.rel (%p532) target = $region56
      $region55: #{cnn_block.2} parent=47 // pred_region
        %p535 = scmp.lt.s32.totalorder %s21, 1
        %s536 = scalar_select %p535, %s21, 1
        %s537 = smul.addr %s536, 8
        %s538 = scalar_lea.vmem %s3, %s537
      $region56: #{cnn_block.2} parent=47 // pred_fallthru
        _
    $region48: #{cnn_block.2} parent=5 // pred_fallthru
      _
  $region6: #{cnn_block.2} parent=0 // loop_footer
    %s14 = sadd.s32 1, %s10
  $region7: #{cnn_block.2} parent=0 // loop_footer_branch
    %9 = sbr.rel target = $region3
  $region8: #{cnn_block.2} parent=0 // loop_exit
    _

// kernel: cnn_block.3
$region0: #{cnn_block.3}
  #allocation0 [shape = 'u32[]', space=smem, size = 0x4, offset = 0x4, fixed_abs, tag = 'smem constant byte address 0x4 - core index']
  #allocation1 [shape = 'u32[144,128]{1,0:T(1,128)}', space=vmem, size = 0x12000, scoped, tag = 'internal scratch']
  %s0 = inlined_call_operand.vmem [shape: f32[4,256], index: 0, kind: input, shape index: {}]
  %s1 = inlined_call_operand.vmem [shape: f32[3,8,4], index: 1, kind: input, shape index: {}]
  %s2 = inlined_call_operand.vmem [shape: f32[2,8,1], index: 2, kind: input, shape index: {}]
  %s3 = inlined_call_operand.vmem [shape: f32[2,8,1], index: 3, kind: input, shape index: {}]
  %s4 = inlined_call_operand.vmem [shape: f32[8,1], index: 4, kind: input, shape index: {}]
  %s5 = inlined_call_operand.vmem [shape: f32[8,1], index: 5, kind: input, shape index: {}]
  %s6 = inlined_call_operand.vmem [shape: f32[8,256], index: 6, kind: output, shape index: {}]
  %s7 = sld [smem:[#allocation0]]
  $region57: #{cnn_block.3} parent=0
    _
  %s9 = ssub.s32 1, %s7
  %s10 = scalar_select 0, %s9, %s7
  loop: start=0, step=1, limit=4
  $region2: #{cnn_block.3} parent=0 // loop_pre_header
    _
  $region3: #{cnn_block.3} parent=0 // loop_header
    %s12 = sphi 0, %s16
    %p13 = scmp.ge.s32.totalorder %s12, 4
    %s22 = sphi 0, %s24
    %s25 = sphi 0, %s22
    %s26 = sphi 0, %s25
    %s42 = sphi 0, %s26
    %s46 = sphi 0, %s46
    %s48 = sphi 0, %s46
    %s49 = sphi 0, %s48
    %s63 = sphi 0, %s49
    %s67 = sphi 0, %s67
    %s69 = sphi 0, %s67
    %s70 = sphi 0, %s69
    %s84 = sphi 0, %s70
    %s88 = sphi 0, %s88
    %s90 = sphi 0, %s88
    %s91 = sphi 0, %s90
    %s105 = sphi 0, %s91
    %s109 = sphi 0, %s109
    %s111 = sphi 0, %s109
    %s112 = sphi 0, %s111
    %s126 = sphi 0, %s112
    %s130 = sphi 0, %s130
    %s132 = sphi 0, %s130
    %s133 = sphi 0, %s132
    %s147 = sphi 0, %s133
    %s153 = sphi 0, %s155
    %s156 = sphi 0, %s153
    %s157 = sphi 0, %s156
    %s173 = sphi 0, %s157
  $region4: #{cnn_block.3} parent=0 // loop_header_branch
    %15 = sbr.rel (%p13) target = $region8
  $region5: #{cnn_block.3} parent=0 // loop_body
    %s17 = ssub.s32 %s12, 1
    %s18 = ssub.s32 %s12, 2
    %s19 = sadd.s32 %s12, 1
    %s20 = ssub.s32 %s12, %s19
    %p21 = scmp.eq.s32.totalorder %s20, 0
    %s23 = sadd.s32 %s22, 1
    %s24 = scalar_select %p21, %s22, %s23
    %p27 = pneg %p21
    %p28 = scmp.eq.s32.totalorder %s12, 1
    %p29 = por %p27, %p28
    %p30 = scmp.ne.s32.totalorder %s22, %s25
    %p31 = scmp.eq.s32.totalorder %s12, 0
    %p32 = por %p30, %p31
    %p33 = scmp.ne.s32.totalorder %s22, %s25
    %p34 = scmp.eq.s32.totalorder %s17, 1
    %p35 = por %p33, %p34
    %p36 = scmp.ne.s32.totalorder %s25, %s26
    %p37 = scmp.eq.s32.totalorder %s17, 0
    %p38 = por %p36, %p37
    %p39 = scmp.ne.s32.totalorder %s25, %s26
    %p40 = scmp.eq.s32.totalorder %s18, 1
    %p41 = por %p39, %p40
    %p43 = scmp.ne.s32.totalorder %s26, %s42
    %p44 = scmp.eq.s32.totalorder %s18, 0
    %p45 = por %p43, %p44
    %s47 = sadd.s32 %s46, 1
    %p50 = scmp.eq.s32.totalorder %s12, 1
    %p51 = scmp.ne.s32.totalorder %s46, %s48
    %p52 = scmp.eq.s32.totalorder %s12, 0
    %p53 = por %p51, %p52
    %p54 = scmp.ne.s32.totalorder %s46, %s48
    %p55 = scmp.eq.s32.totalorder %s17, 1
    %p56 = por %p54, %p55
    %p57 = scmp.ne.s32.totalorder %s48, %s49
    %p58 = scmp.eq.s32.totalorder %s17, 0
    %p59 = por %p57, %p58
    %p60 = scmp.ne.s32.totalorder %s48, %s49
    %p61 = scmp.eq.s32.totalorder %s18, 1
    %p62 = por %p60, %p61
    %p64 = scmp.ne.s32.totalorder %s49, %s63
    %p65 = scmp.eq.s32.totalorder %s18, 0
    %p66 = por %p64, %p65
    %s68 = sadd.s32 %s67, 1
    %p71 = scmp.eq.s32.totalorder %s12, 1
    %p72 = scmp.ne.s32.totalorder %s67, %s69
    %p73 = scmp.eq.s32.totalorder %s12, 0
    %p74 = por %p72, %p73
    %p75 = scmp.ne.s32.totalorder %s67, %s69
    %p76 = scmp.eq.s32.totalorder %s17, 1
    %p77 = por %p75, %p76
    %p78 = scmp.ne.s32.totalorder %s69, %s70
    %p79 = scmp.eq.s32.totalorder %s17, 0
    %p80 = por %p78, %p79
    %p81 = scmp.ne.s32.totalorder %s69, %s70
    %p82 = scmp.eq.s32.totalorder %s18, 1
    %p83 = por %p81, %p82
    %p85 = scmp.ne.s32.totalorder %s70, %s84
    %p86 = scmp.eq.s32.totalorder %s18, 0
    %p87 = por %p85, %p86
    %s89 = sadd.s32 %s88, 1
    %p92 = scmp.eq.s32.totalorder %s12, 1
    %p93 = scmp.ne.s32.totalorder %s88, %s90
    %p94 = scmp.eq.s32.totalorder %s12, 0
    %p95 = por %p93, %p94
    %p96 = scmp.ne.s32.totalorder %s88, %s90
    %p97 = scmp.eq.s32.totalorder %s17, 1
    %p98 = por %p96, %p97
    %p99 = scmp.ne.s32.totalorder %s90, %s91
    %p100 = scmp.eq.s32.totalorder %s17, 0
    %p101 = por %p99, %p100
    %p102 = scmp.ne.s32.totalorder %s90, %s91
    %p103 = scmp.eq.s32.totalorder %s18, 1
    %p104 = por %p102, %p103
    %p106 = scmp.ne.s32.totalorder %s91, %s105
    %p107 = scmp.eq.s32.totalorder %s18, 0
    %p108 = por %p106, %p107
    %s110 = sadd.s32 %s109, 1
    %p113 = scmp.eq.s32.totalorder %s12, 1
    %p114 = scmp.ne.s32.totalorder %s109, %s111
    %p115 = scmp.eq.s32.totalorder %s12, 0
    %p116 = por %p114, %p115
    %p117 = scmp.ne.s32.totalorder %s109, %s111
    %p118 = scmp.eq.s32.totalorder %s17, 1
    %p119 = por %p117, %p118
    %p120 = scmp.ne.s32.totalorder %s111, %s112
    %p121 = scmp.eq.s32.totalorder %s17, 0
    %p122 = por %p120, %p121
    %p123 = scmp.ne.s32.totalorder %s111, %s112
    %p124 = scmp.eq.s32.totalorder %s18, 1
    %p125 = por %p123, %p124
    %p127 = scmp.ne.s32.totalorder %s112, %s126
    %p128 = scmp.eq.s32.totalorder %s18, 0
    %p129 = por %p127, %p128
    %s131 = sadd.s32 %s130, 1
    %p134 = scmp.eq.s32.totalorder %s12, 1
    %p135 = scmp.ne.s32.totalorder %s130, %s132
    %p136 = scmp.eq.s32.totalorder %s12, 0
    %p137 = por %p135, %p136
    %p138 = scmp.ne.s32.totalorder %s130, %s132
    %p139 = scmp.eq.s32.totalorder %s17, 1
    %p140 = por %p138, %p139
    %p141 = scmp.ne.s32.totalorder %s132, %s133
    %p142 = scmp.eq.s32.totalorder %s17, 0
    %p143 = por %p141, %p142
    %p144 = scmp.ne.s32.totalorder %s132, %s133
    %p145 = scmp.eq.s32.totalorder %s18, 1
    %p146 = por %p144, %p145
    %p148 = scmp.ne.s32.totalorder %s133, %s147
    %p149 = scmp.eq.s32.totalorder %s18, 0
    %p150 = por %p148, %p149
    %s151 = ssub.s32 %s12, %s19
    %p152 = scmp.eq.s32.totalorder %s151, 0
    %s154 = sadd.s32 %s153, 1
    %s155 = scalar_select %p152, %s153, %s154
    %p158 = pneg %p152
    %p159 = scmp.eq.s32.totalorder %s12, 1
    %p160 = por %p158, %p159
    %p161 = scmp.ne.s32.totalorder %s153, %s156
    %p162 = scmp.eq.s32.totalorder %s12, 0
    %p163 = por %p161, %p162
    %p164 = scmp.ne.s32.totalorder %s153, %s156
    %p165 = scmp.eq.s32.totalorder %s17, 1
    %p166 = por %p164, %p165
    %p167 = scmp.ne.s32.totalorder %s156, %s157
    %p168 = scmp.eq.s32.totalorder %s17, 0
    %p169 = por %p167, %p168
    %p170 = scmp.ne.s32.totalorder %s156, %s157
    %p171 = scmp.eq.s32.totalorder %s18, 1
    %p172 = por %p170, %p171
    %p174 = scmp.ne.s32.totalorder %s157, %s173
    %p175 = scmp.eq.s32.totalorder %s18, 0
    %p176 = por %p174, %p175
    %p177 = scmp.le.s32.totalorder 1, %s12
    %p178 = scmp.lt.s32.totalorder %s12, 3
    %p179 = pnand %p177, %p178
    %p180 = pneg %p179
    // Predicated region
    $region9: #{cnn_block.3} parent=5 // pred_check
      _
    $region10: #{cnn_block.3} parent=5 // pred_check_branch
      %182 = sbr.rel (%p179) target = $region12
    $region11: #{cnn_block.3} parent=5 // pred_region
      %s183 = ssub.s32 %s12, 1
      // Predicated region
      $region13: #{cnn_block.3} parent=11 // pred_check
        %p184 = pneg %p59
      $region14: #{cnn_block.3} parent=11 // pred_check_branch
        %186 = sbr.rel (%p184) target = $region16
      $region15: #{cnn_block.3} parent=11 // pred_region
        _
      $region16: #{cnn_block.3} parent=11 // pred_fallthru
        _
      // Predicated region
      $region17: #{cnn_block.3} parent=11 // pred_check
        %p187 = pneg %p80
      $region18: #{cnn_block.3} parent=11 // pred_check_branch
        %189 = sbr.rel (%p187) target = $region20
      $region19: #{cnn_block.3} parent=11 // pred_region
        _
      $region20: #{cnn_block.3} parent=11 // pred_fallthru
        _
      // Predicated region
      $region21: #{cnn_block.3} parent=11 // pred_check
        %p190 = pneg %p101
      $region22: #{cnn_block.3} parent=11 // pred_check_branch
        %192 = sbr.rel (%p190) target = $region24
      $region23: #{cnn_block.3} parent=11 // pred_region
        _
      $region24: #{cnn_block.3} parent=11 // pred_fallthru
        _
      // Predicated region
      $region25: #{cnn_block.3} parent=11 // pred_check
        %p193 = pneg %p122
      $region26: #{cnn_block.3} parent=11 // pred_check_branch
        %195 = sbr.rel (%p193) target = $region28
      $region27: #{cnn_block.3} parent=11 // pred_region
        _
      $region28: #{cnn_block.3} parent=11 // pred_fallthru
        _
      // Predicated region
      $region29: #{cnn_block.3} parent=11 // pred_check
        %p196 = pneg %p143
      $region30: #{cnn_block.3} parent=11 // pred_check_branch
        %198 = sbr.rel (%p196) target = $region32
      $region31: #{cnn_block.3} parent=11 // pred_region
        _
      $region32: #{cnn_block.3} parent=11 // pred_fallthru
        _
    $region12: #{cnn_block.3} parent=5 // pred_fallthru
      _
    %p199 = scmp.lt.s32.totalorder %s12, 2
    // Predicated region
    $region33: #{cnn_block.3} parent=5 // pred_check
      %p200 = pneg %p199
    $region34: #{cnn_block.3} parent=5 // pred_check_branch
      %202 = sbr.rel (%p200) target = $region36
    $region35: #{cnn_block.3} parent=5 // pred_region
      // Predicated region
      $region37: #{cnn_block.3} parent=35 // pred_check
        %p203 = pneg %p32
      $region38: #{cnn_block.3} parent=35 // pred_check_branch
        %205 = sbr.rel (%p203) target = $region40
      $region39: #{cnn_block.3} parent=35 // pred_region
        %p206 = scmp.lt.s32.totalorder %s12, 1
        %s207 = scalar_select %p206, %s12, 1
        %s208 = smul.addr %s207, 4
        %s209 = scalar_lea.vmem %s0, %s208
      $region40: #{cnn_block.3} parent=35 // pred_fallthru
        _
    $region36: #{cnn_block.3} parent=5 // pred_fallthru
      _
    %p210 = scmp.le.s32.totalorder 1, %s12
    %p211 = scmp.lt.s32.totalorder %s12, 3
    %p212 = pnand %p210, %p211
    %p213 = pneg %p212
    // Predicated region
    $region41: #{cnn_block.3} parent=5 // pred_check
      _
    $region42: #{cnn_block.3} parent=5 // pred_check_branch
      %215 = sbr.rel (%p212) target = $region44
    $region43: #{cnn_block.3} parent=5 // pred_region
      %s216 = ssub.s32 %s12, 1
      %p217 = scmp.lt.s32.totalorder %s17, 1
      %s218 = scalar_select %p217, %s17, 1
      %s219 = smul.addr %s218, 4
      %s220 = scalar_lea.vmem %s0, %s219
      %p221 = pneg %p38
      %p222 = pneg %p35
      %p223 = pneg %p59
      %p224 = pneg %p56
      %p225 = pneg %p80
      %p226 = pneg %p77
      %p227 = pneg %p101
      %p228 = pneg %p98
      %p229 = pneg %p122
      %p230 = pneg %p119
      %p231 = pneg %p143
      %p232 = pneg %p140
      %p233 = pneg %p169
      %p234 = pneg %p166
      %p235 = scmp.lt.s32.totalorder %s17, 1
      %s236 = scalar_select %p235, %s17, 1
      %s237 = smul.addr %s236, 8
      %s238 = scalar_lea.vmem %s6, %s237
      %p239 = scmp.lt.s32.totalorder %s17, 1
      %s240 = scalar_select %p239, %s17, 1
      %s241 = smul.addr %s240, 4
      %s242 = scalar_lea.vmem %s0, %s241
      %p243 = scmp.lt.s32.totalorder %s17, 1
      %s244 = scalar_select %p243, %s17, 1
      %s245 = smul.addr %s244, 8
      %s246 = scalar_lea.vmem %s6, %s245
      %v247 = vld [vmem:[%s242] sm:$0xf]
      %v248 = vlaneseq
      %v249 = vand.u32 %v248, 127
      %vm250 = vcmp.lt.s32.totalorder %v249, 0
      %v251 = vsub.s32 0, %v249
      %v252 = vsel %vm250, %v251, %v249
      %v253 = vshrl.u32 %v252, 4
      %v254 = vand.u32 %v252, 15
      %v255 = vsub.s32 0, %v254
      %v256 = vsel %vm250, %v255, %v254
      %vm257 = vcmp.ne.s32.totalorder %v256, 0
      %vm258 = vcmp.lt.s32.totalorder %v256, 0
      %vm259 = vmand %vm258, %vm257
      %v260 = vadd.s32 %v256, 16
      %v261 = vsel %vm259, %v260, %v256
      %263 = vrot.lane.b32.xlu0 %v247, 1
      %v264 = vpop.permute.xlu0 %263
      %vm266 = vcmask 7168
      %v267 = vsel %vm266, 0.0, %v264
      %v268 = vsel %vm266, %v264, 0.0
      %v269 = vadd.s32 %v261, 4294967295
      %vm270 = vcmp.ge.s32.totalorder %v269, 0
      %vm271 = vcmp.lt.s32.totalorder %v269, 16
      %vm272 = vmand %vm270, %vm271
      %v273 = vsel %vm272, 1, 0
      %vm274 = vcmp.eq.s32.totalorder %v273, 1
      %v275 = vsel %vm274, %v267, 0.0
      %v276 = vld [vmem:[%s1] sm:$0xff]
      %s277 = scalar_lea.vmem %s1, 8
      %v278 = vld [vmem:[%s277] sm:$0xff]
      %281 = vrot.lane.b32.xlu0 %v267, 127
      %v282 = vpop.permute.xlu0 %281
      %283 = vrot.lane.b32.xlu0 %v268, 127
      %v284 = vpop.permute.xlu0 %283
      %vm285 = vcmask 1039360
      %v286 = vsel %vm285, %v282, %v284
      %vm287 = vcmask 31744
      %v289 = vsel %vm287, %v278, 0
      %vm291 = vcmask 1043456
      %v292 = vsel %vm291, %v286, 0
      %294 = vmatprep.subr.mxu0 0.0
      %295 = vmatpush1.msra.mxu0 %v292
      %296 = vmatprep.subr.mxu0 0.0
      %297 = vmatpush1.msra.mxu0 0.0
      %298 = vmatprep.subr.mxu0 0.0
      %299 = vmatpush1.msra.mxu0 0.0
      %300 = vmatprep.subr.mxu0 0.0
      %301 = vmatpush1.msra.mxu0 0.0
      %302 = vmatprep.subr.mxu0 0.0
      %303 = vmatpush1.msra.mxu0 0.0
      %304 = vmatprep.subr.mxu0 0.0
      %305 = vmatpush1.msra.mxu0 0.0
      %306 = vmatprep.subr.mxu0 0.0
      %307 = vmatpush1.msra.mxu0 0.0
      %308 = vmatprep.subr.mxu0 0.0
      %309 = vmatpush1.msra.mxu0 0.0
      %310 = vmatprep.subr.mxu0 0.0
      %311 = vmatpush1.msra.mxu0 0.0
      %312 = vmatprep.subr.mxu0 0.0
      %313 = vmatpush1.msra.mxu0 0.0
      %314 = vmatprep.subr.mxu0 0.0
      %315 = vmatpush1.msra.mxu0 0.0
      %316 = vmatprep.subr.mxu0 0.0
      %317 = vmatpush1.msra.mxu0 0.0
      %318 = vmatprep.subr.mxu0 0.0
      %319 = vmatpush1.msra.mxu0 0.0
      %320 = vmatprep.subr.mxu0 0.0
      %321 = vmatpush1.msra.mxu0 0.0
      %322 = vmatprep.subr.mxu0 0.0
      %323 = vmatpush1.msra.mxu0 0.0
      %324 = vmatprep.subr.mxu0 0.0
      %325 = vmatpush1.msra.mxu0 0.0
      %326 = vmatprep.subr.mxu0 0.0
      %327 = vmatpush1.msra.mxu0 0.0
      %328 = vmatprep.subr.mxu0 0.0
      %329 = vmatpush1.msra.mxu0 0.0
      %330 = vmatprep.subr.mxu0 0.0
      %331 = vmatpush1.msra.mxu0 0.0
      %332 = vmatprep.subr.mxu0 0.0
      %333 = vmatpush1.msra.mxu0 0.0
      %334 = vmatprep.subr.mxu0 0.0
      %335 = vmatpush1.msra.mxu0 0.0
      %336 = vmatprep.subr.mxu0 0.0
      %337 = vmatpush1.msra.mxu0 0.0
      %338 = vmatprep.subr.mxu0 0.0
      %339 = vmatpush1.msra.mxu0 0.0
      %340 = vmatprep.subr.mxu0 0.0
      %341 = vmatpush1.msra.mxu0 0.0
      %342 = vmatprep.subr.mxu0 0.0
      %343 = vmatpush1.msra.mxu0 0.0
      %344 = vmatprep.subr.mxu0 0.0
      %345 = vmatpush1.msra.mxu0 0.0
      %346 = vmatprep.subr.mxu0 0.0
      %347 = vmatpush1.msra.mxu0 0.0
      %348 = vmatprep.subr.mxu0 0.0
      %349 = vmatpush1.msra.mxu0 0.0
      %350 = vmatprep.subr.mxu0 0.0
      %351 = vmatpush1.msra.mxu0 0.0
      %352 = vmatprep.subr.mxu0 0.0
      %353 = vmatpush1.msra.mxu0 0.0
      %354 = vmatprep.subr.mxu0 0.0
      %355 = vmatpush1.msra.mxu0 0.0
      %356 = vmatprep.subr.mxu0 0.0
      %357 = vmatpush1.msra.mxu0 0.0
      %358 = vmatprep.mubr.f32.mxu0 0.0
      %359 = vmatmul.mubr.f32.gmra.mrb[0].mxu0 %v289
      %v360 = vpop.f32.mrb[0].mxu0
      %v361 = vadd.f32 0.0, %v360
      %v362 = vpop.f32.mrb[0].mxu0
      %363 = vdwg.mxu0
      %v365 = vsel %vm287, %v276, 0
      %v368 = vsel %vm291, %v275, 0
      %370 = vmatprep.subr.mxu0 0.0
      %371 = vmatpush1.msra.mxu0 %v368
      %372 = vmatprep.subr.mxu0 0.0
      %373 = vmatpush1.msra.mxu0 0.0
      %374 = vmatprep.subr.mxu0 0.0
      %375 = vmatpush1.msra.mxu0 0.0
      %376 = vmatprep.subr.mxu0 0.0
      %377 = vmatpush1.msra.mxu0 0.0
      %378 = vmatprep.subr.mxu0 0.0
      %379 = vmatpush1.msra.mxu0 0.0
      %380 = vmatprep.subr.mxu0 0.0
      %381 = vmatpush1.msra.mxu0 0.0
      %382 = vmatprep.subr.mxu0 0.0
      %383 = vmatpush1.msra.mxu0 0.0
      %384 = vmatprep.subr.mxu0 0.0
      %385 = vmatpush1.msra.mxu0 0.0
      %386 = vmatprep.subr.mxu0 0.0
      %387 = vmatpush1.msra.mxu0 0.0
      %388 = vmatprep.subr.mxu0 0.0
      %389 = vmatpush1.msra.mxu0 0.0
      %390 = vmatprep.subr.mxu0 0.0
      %391 = vmatpush1.msra.mxu0 0.0
      %392 = vmatprep.subr.mxu0 0.0
      %393 = vmatpush1.msra.mxu0 0.0
      %394 = vmatprep.subr.mxu0 0.0
      %395 = vmatpush1.msra.mxu0 0.0
      %396 = vmatprep.subr.mxu0 0.0
      %397 = vmatpush1.msra.mxu0 0.0
      %398 = vmatprep.subr.mxu0 0.0
      %399 = vmatpush1.msra.mxu0 0.0
      %400 = vmatprep.subr.mxu0 0.0
      %401 = vmatpush1.msra.mxu0 0.0
      %402 = vmatprep.subr.mxu0 0.0
      %403 = vmatpush1.msra.mxu0 0.0
      %404 = vmatprep.subr.mxu0 0.0
      %405 = vmatpush1.msra.mxu0 0.0
      %406 = vmatprep.subr.mxu0 0.0
      %407 = vmatpush1.msra.mxu0 0.0
      %408 = vmatprep.subr.mxu0 0.0
      %409 = vmatpush1.msra.mxu0 0.0
      %410 = vmatprep.subr.mxu0 0.0
      %411 = vmatpush1.msra.mxu0 0.0
      %412 = vmatprep.subr.mxu0 0.0
      %413 = vmatpush1.msra.mxu0 0.0
      %414 = vmatprep.subr.mxu0 0.0
      %415 = vmatpush1.msra.mxu0 0.0
      %416 = vmatprep.subr.mxu0 0.0
      %417 = vmatpush1.msra.mxu0 0.0
      %418 = vmatprep.subr.mxu0 0.0
      %419 = vmatpush1.msra.mxu0 0.0
      %420 = vmatprep.subr.mxu0 0.0
      %421 = vmatpush1.msra.mxu0 0.0
      %422 = vmatprep.subr.mxu0 0.0
      %423 = vmatpush1.msra.mxu0 0.0
      %424 = vmatprep.subr.mxu0 0.0
      %425 = vmatpush1.msra.mxu0 0.0
      %426 = vmatprep.subr.mxu0 0.0
      %427 = vmatpush1.msra.mxu0 0.0
      %428 = vmatprep.subr.mxu0 0.0
      %429 = vmatpush1.msra.mxu0 0.0
      %430 = vmatprep.subr.mxu0 0.0
      %431 = vmatpush1.msra.mxu0 0.0
      %432 = vmatprep.subr.mxu0 0.0
      %433 = vmatpush1.msra.mxu0 0.0
      %434 = vmatprep.mubr.f32.mxu0 0.0
      %435 = vmatmul.mubr.f32.gmra.mrb[0].mxu0 %v365
      %v436 = vpop.f32.mrb[0].mxu0
      %v437 = vadd.f32 %v361, %v436
      %v438 = vpop.f32.mrb[0].mxu0
      %439 = vdwg.mxu0
      %v440 = vadd.s32 %v261, 1
      %vm441 = vcmp.ge.s32.totalorder %v440, 0
      %vm442 = vcmp.lt.s32.totalorder %v440, 16
      %vm443 = vmand %vm441, %vm442
      %v444 = vsel %vm443, 1, 0
      %vm445 = vcmp.eq.s32.totalorder %v444, 1
      %446 = vrot.lane.b32.xlu0 %v267, 126
      %v447 = vpop.permute.xlu0 %446
      %448 = vrot.lane.b32.xlu0 %v268, 126
      %v449 = vpop.permute.xlu0 %448
      %vm450 = vcmask 1031168
      %v451 = vsel %vm450, %v447, %v449
      %v453 = vsel %vm445, %v451, 0.0
      %s454 = scalar_lea.vmem %s1, 16
      %v455 = vld [vmem:[%s454] sm:$0xff]
      %v457 = vsel %vm287, %v455, 0
      %v460 = vsel %vm291, %v453, 0
      %462 = vmatprep.subr.mxu0 0.0
      %463 = vmatpush1.msra.mxu0 %v460
      %464 = vmatprep.subr.mxu0 0.0
      %465 = vmatpush1.msra.mxu0 0.0
      %466 = vmatprep.subr.mxu0 0.0
      %467 = vmatpush1.msra.mxu0 0.0
      %468 = vmatprep.subr.mxu0 0.0
      %469 = vmatpush1.msra.mxu0 0.0
      %470 = vmatprep.subr.mxu0 0.0
      %471 = vmatpush1.msra.mxu0 0.0
      %472 = vmatprep.subr.mxu0 0.0
      %473 = vmatpush1.msra.mxu0 0.0
      %474 = vmatprep.subr.mxu0 0.0
      %475 = vmatpush1.msra.mxu0 0.0
      %476 = vmatprep.subr.mxu0 0.0
      %477 = vmatpush1.msra.mxu0 0.0
      %478 = vmatprep.subr.mxu0 0.0
      %479 = vmatpush1.msra.mxu0 0.0
      %480 = vmatprep.subr.mxu0 0.0
      %481 = vmatpush1.msra.mxu0 0.0
      %482 = vmatprep.subr.mxu0 0.0
      %483 = vmatpush1.msra.mxu0 0.0
      %484 = vmatprep.subr.mxu0 0.0
      %485 = vmatpush1.msra.mxu0 0.0
      %486 = vmatprep.subr.mxu0 0.0
      %487 = vmatpush1.msra.mxu0 0.0
      %488 = vmatprep.subr.mxu0 0.0
      %489 = vmatpush1.msra.mxu0 0.0
      %490 = vmatprep.subr.mxu0 0.0
      %491 = vmatpush1.msra.mxu0 0.0
      %492 = vmatprep.subr.mxu0 0.0
      %493 = vmatpush1.msra.mxu0 0.0
      %494 = vmatprep.subr.mxu0 0.0
      %495 = vmatpush1.msra.mxu0 0.0
      %496 = vmatprep.subr.mxu0 0.0
      %497 = vmatpush1.msra.mxu0 0.0
      %498 = vmatprep.subr.mxu0 0.0
      %499 = vmatpush1.msra.mxu0 0.0
      %500 = vmatprep.subr.mxu0 0.0
      %501 = vmatpush1.msra.mxu0 0.0
      %502 = vmatprep.subr.mxu0 0.0
      %503 = vmatpush1.msra.mxu0 0.0
      %504 = vmatprep.subr.mxu0 0.0
      %505 = vmatpush1.msra.mxu0 0.0
      %506 = vmatprep.subr.mxu0 0.0
      %507 = vmatpush1.msra.mxu0 0.0
      %508 = vmatprep.subr.mxu0 0.0
      %509 = vmatpush1.msra.mxu0 0.0
      %510 = vmatprep.subr.mxu0 0.0
      %511 = vmatpush1.msra.mxu0 0.0
      %512 = vmatprep.subr.mxu0 0.0
      %513 = vmatpush1.msra.mxu0 0.0
      %514 = vmatprep.subr.mxu0 0.0
      %515 = vmatpush1.msra.mxu0 0.0
      %516 = vmatprep.subr.mxu0 0.0
      %517 = vmatpush1.msra.mxu0 0.0
      %518 = vmatprep.subr.mxu0 0.0
      %519 = vmatpush1.msra.mxu0 0.0
      %520 = vmatprep.subr.mxu0 0.0
      %521 = vmatpush1.msra.mxu0 0.0
      %522 = vmatprep.subr.mxu0 0.0
      %523 = vmatpush1.msra.mxu0 0.0
      %524 = vmatprep.subr.mxu0 0.0
      %525 = vmatpush1.msra.mxu0 0.0
      %526 = vmatprep.mubr.f32.mxu0 0.0
      %527 = vmatmul.mubr.f32.gmra.mrb[0].mxu0 %v457
      %v528 = vpop.f32.mrb[0].mxu0
      %v529 = vadd.f32 0.0, %v528
      %v530 = vpop.f32.mrb[0].mxu0
      %531 = vdwg.mxu0
      %v532 = vadd.f32 %v437, %v529
      %v533 = vld [vmem:[%s2] sm:$0xff]
      %v534 = vld [vmem:[%s3] sm:$0xff]
      %s535 = scalar_lea.vmem %s2, 8
      %v536 = vld [vmem:[%s535] sm:$0xff]
      %v537 = vadd.f32 %v533, %v536
      %s538 = scalar_lea.vmem %s3, 8
      %v539 = vld [vmem:[%s538] sm:$0xff]
      %v540 = vadd.f32 %v534, %v539
      %v541 = vmul.f32 %v537, 0.00390625
      %v542 = vmul.f32 %v540, 0.00390625
      %v543 = vmul.f32 %v541, %v541
      %v544 = vsub.f32 %v542, %v543
      %v545 = vmax.f32 %v544, 0.0
      %v546 = vld [vmem:[%s4] sm:$0xff]
      %v547 = vadd.f32 %v545, 1e-05
      %v548 = vrsqrt.pop %v547
      %v549 = vmul.f32 %v546, %v548
      %v550 = vld [vmem:[%s5] sm:$0xff]
      %v551 = vmul.f32 %v541, %v549
      %v552 = vsub.f32 %v550, %v551
      %554 = vset.pattern.permute.xlu0 0
      %555 = vperm.xlu0 %554, %v549
      %v556 = vpop.permute.xlu0 %555
      %v558 = vmul.f32 %v532, %v556
      %560 = vset.pattern.permute.xlu0 0
      %561 = vperm.xlu0 %560, %v552
      %v562 = vpop.permute.xlu0 %561
      %v564 = vadd.f32 %v558, %v562
      %v565 = vmax.f32 %v564, 0.0
      %566 = vst [vmem:[%s246] sm:$0xff] %v565
      %p567 = scmp.lt.s32.totalorder %s17, 1
      %s568 = scalar_select %p567, %s17, 1
      %s569 = smul.addr %s568, 8
      %s570 = scalar_lea.vmem %s6, %s569
      // Predicated region
      $region45: #{cnn_block.3} parent=43 // pred_check
        %p571 = pneg %p166
      $region46: #{cnn_block.3} parent=43 // pred_check_branch
        %573 = sbr.rel (%p571) target = $region48
      $region47: #{cnn_block.3} parent=43 // pred_region
        _
      $region48: #{cnn_block.3} parent=43 // pred_fallthru
        _
    $region44: #{cnn_block.3} parent=5 // pred_fallthru
      _
    %p574 = scmp.le.s32.totalorder 2, %s12
    // Predicated region
    $region49: #{cnn_block.3} parent=5 // pred_check
      %p575 = pneg %p574
    $region50: #{cnn_block.3} parent=5 // pred_check_branch
      %577 = sbr.rel (%p575) target = $region52
    $region51: #{cnn_block.3} parent=5 // pred_region
      %s578 = ssub.s32 %s12, 2
      // Predicated region
      $region53: #{cnn_block.3} parent=51 // pred_check
        %p579 = pneg %p172
      $region54: #{cnn_block.3} parent=51 // pred_check_branch
        %581 = sbr.rel (%p579) target = $region56
      $region55: #{cnn_block.3} parent=51 // pred_region
        %p582 = scmp.lt.s32.totalorder %s18, 1
        %s583 = scalar_select %p582, %s18, 1
        %s584 = smul.addr %s583, 8
        %s585 = scalar_lea.vmem %s6, %s584
      $region56: #{cnn_block.3} parent=51 // pred_fallthru
        _
    $region52: #{cnn_block.3} parent=5 // pred_fallthru
      _
  $region6: #{cnn_block.3} parent=0 // loop_footer
    %s16 = sadd.s32 1, %s12
  $region7: #{cnn_block.3} parent=0 // loop_footer_branch
    %11 = sbr.rel target = $region3
  $region8: #{cnn_block.3} parent=0 // loop_exit
    _

</llo_original>
